<compile_context>
chip_gen: v5e
topology: v5e:2x2
jax: 0.10.0
libtpu: 0.0.40
codegen_flags: <defaults>
</compile_context>

<pallas_src>
import functools

import jax
import jax.numpy as jnp
from jax import lax
from jax.experimental import pallas as pl
from jax.experimental.pallas import tpu as pltpu

EPS_NORM = 1e-8
# Finite "-inf" for padded class logits: exp() underflows to exactly 0 and
# logp/logq stay finite, so p*(logp-logq) == 0 for padded classes.
# Do NOT replace with -jnp.inf (would give 0*NaN).
NEG_INF = -1e30


def _round_up(x, m):
    return -(-x // m) * m


def _channel_unit_vector(d, n_ch, hwp):
    """d: [T, n_ch*hwp] flattened (C, H*W).  Per spatial position, L2-normalize
    across channels == torch.norm(d, dim=1, keepdim=True); d /= (norm + 1e-8)."""
    ssum = None
    for c in range(n_ch):
        chunk = d[:, c * hwp:(c + 1) * hwp]        # lane-aligned slice (hwp % 128 == 0)
        sq = chunk * chunk
        ssum = sq if ssum is None else ssum + sq   # [T, hwp]
    inv = 1.0 / (jnp.sqrt(ssum) + EPS_NORM)        # exact; same eps placement as torch
    inv_full = jnp.concatenate([inv] * n_ch, axis=1)   # one broadcast factor ...
    return d * inv_full                                # ... one multiply, no per-chan stores


def _log_softmax(logits):
    m = jnp.max(logits, axis=-1, keepdims=True)
    shifted = logits - m
    s = jnp.sum(jnp.exp(shifted), axis=-1, keepdims=True)
    return shifted - jnp.log(s)


def _vat_kernel(x_ref, d0_ref, w_ref, wt_ref, b_ref, kl_ref, *,
                xi, epsilon, iterations, b_real, n_ch, hwp, tile_b):
    kp = w_ref.shape[1]
    x = x_ref[...]                      # [T, Dp]  f32
    w = w_ref[...]                      # [Dp, Kp] bf16
    wt = wt_ref[...]                    # [Kp, Dp] bf16 (host-transposed; no in-kernel vxpose)
    bias = jnp.broadcast_to(b_ref[...], (tile_b, kp))   # hoisted once (no CSE of broadcasts)

    x_bf = x.astype(jnp.bfloat16)

    # --- forward: p = softmax(net(X)), logp = log_softmax(net(X)) (exact) ---
    logits = jnp.dot(x_bf, w, preferred_element_type=jnp.float32) + bias
    logp = _log_softmax(logits)
    p = jnp.exp(logp)                   # p == exp(logp) exactly -> unbiased KL

    # --- d = unit_vector(rand(X.shape) - 0.5), random drawn on the host -----
    d = _channel_unit_vector(d0_ref[...], n_ch, hwp)

    # --- power iteration: d <- unit_vector(dKL/dr), r = xi * d --------------
    def body(_, d_cur):
        xr = (x + xi * d_cur).astype(jnp.bfloat16)
        lq = jnp.dot(xr, w, preferred_element_type=jnp.float32) + bias
        q = jnp.exp(_log_softmax(lq))
        # dKL/dlogits up to a positive scalar (1/B dropped: cancelled by unit norm)
        g_logits = (q - p).astype(jnp.bfloat16)
        g = jnp.dot(g_logits, wt, preferred_element_type=jnp.float32)   # [T, Dp]
        return _channel_unit_vector(g, n_ch, hwp)

    d = lax.fori_loop(0, iterations, body, d, unroll=True)

    # --- lds = KL_batchmean( log_softmax(net(X + eps*d)) || p ) -------------
    xr = (x + epsilon * d).astype(jnp.bfloat16)
    lq = jnp.dot(xr, w, preferred_element_type=jnp.float32) + bias
    logq = _log_softmax(lq)
    per_elem = p * (logp - logq)                  # padded classes: p == 0 exactly
    kl_row = jnp.sum(per_elem, axis=1, keepdims=True)            # [T, 1]
    row0 = pl.program_id(0) * tile_b
    rows = row0 + lax.broadcasted_iota(jnp.int32, kl_row.shape, 0)
    kl_row = jnp.where(rows < b_real, kl_row, 0.0)               # mask padded rows
    kl_ref[0, 0] = jnp.sum(kl_row) * (1.0 / b_real)              # per-tile partial


def vat_loss(X, W, b, key, epsilon=1.0, iterations=2, xi=10.0, tile_b_target=128):
    """VATLoss.forward equivalent for a fixed linear 'network' (W, b)."""
    Bn, C, H, Wd = X.shape
    hw = H * Wd
    K = W.shape[1]

    hwp = max(128, _round_up(hw, 128))      # lane-align each per-channel slice
    dp = C * hwp
    kp = max(128, _round_up(K, 128))        # full 128-lane class dim

    bp = max(8, _round_up(Bn, 8))           # sublane multiple
    if bp >= tile_b_target:
        bp = _round_up(bp, tile_b_target)
        tile_b = tile_b_target
    else:
        tile_b = bp
    num_tiles = bp // tile_b

    def pad_nchw(a):                         # [Bn, C, H, Wd] -> [bp, C*hwp] f32
        a3 = a.reshape(Bn, C, hw).astype(jnp.float32)
        out = jnp.zeros((bp, C, hwp), jnp.float32).at[:Bn, :, :hw].set(a3)
        return out.reshape(bp, dp)

    x_pad = pad_nchw(X)
    d0 = jax.random.uniform(key, X.shape, dtype=jnp.float32) - 0.5
    d0_pad = pad_nchw(d0)

    w3 = W.astype(jnp.float32).reshape(C, hw, K)
    w_full = jnp.zeros((C, hwp, kp), jnp.float32).at[:, :hw, :K].set(w3).reshape(dp, kp)
    w_bf = w_full.astype(jnp.bfloat16)
    wt_bf = w_full.T.astype(jnp.bfloat16)    # host transpose -> no in-kernel relayout

    b_pad = jnp.full((1, kp), NEG_INF, jnp.float32).at[:, :K].set(
        b.reshape(1, K).astype(jnp.float32))

    kernel = functools.partial(
        _vat_kernel, xi=float(xi), epsilon=float(epsilon),
        iterations=int(iterations), b_real=int(Bn), n_ch=int(C),
        hwp=int(hwp), tile_b=int(tile_b))

    compiler_params = None
    if jax.default_backend() == "tpu":
        vmem_est = (2 * dp * kp * 2            # W + W^T resident (bf16)
                    + 2 * 2 * tile_b * dp * 4  # x, d0 tiles, double-buffered (f32)
                    + 8 * tile_b * dp * 4      # live f32 temporaries (xr, g, norm, ...)
                    + (1 << 20))
        compiler_params = pltpu.CompilerParams(
            dimension_semantics=("parallel",),                       # megacore on v7x
            vmem_limit_bytes=int(min(max(vmem_est, 8 << 20), 100 << 20)))

    # TODO(synk): random.random() < PROBABILITY image logging (write_images /
    # SummaryWriter) is host-side I/O with no Pallas equivalent; omitted.
    kl_parts = pl.pallas_call(
        kernel,
        out_shape=jax.ShapeDtypeStruct((num_tiles, 1), jnp.float32),
        grid=(num_tiles,),
        in_specs=[
            pl.BlockSpec((tile_b, dp), lambda i: (i, 0)),   # x tile
            pl.BlockSpec((tile_b, dp), lambda i: (i, 0)),   # d0 tile
            pl.BlockSpec((dp, kp), lambda i: (0, 0)),       # W     (resident, bf16)
            pl.BlockSpec((kp, dp), lambda i: (0, 0)),       # W^T   (resident, bf16)
            pl.BlockSpec((1, kp), lambda i: (0, 0)),        # bias
        ],
        out_specs=pl.BlockSpec((1, 1), lambda i: (i, 0),
                               memory_space=pltpu.MemorySpace.SMEM),
        compiler_params=compiler_params,
    )(x_pad, d0_pad, w_bf, wt_bf, b_pad)

    return jnp.sum(kl_parts)   # sum of per-tile partials (already divided by B)


if __name__ == "__main__":
    key = jax.random.PRNGKey(0)
    kx, kw, kb, kd = jax.random.split(key, 4)

    B, C, H, Wd = 2, 4, 16, 16
    K = 10                        # classes of the synthetic linear network
    D = C * H * Wd

    X = jax.random.normal(kx, (B, C, H, Wd), dtype=jnp.float32)
    W = 0.02 * jax.random.normal(kw, (D, K), dtype=jnp.float32)
    bias = 0.01 * jax.random.normal(kb, (1, K), dtype=jnp.float32)

    lds = vat_loss(X, W, bias, kd, epsilon=1.0, iterations=2, xi=10.0)
    jax.block_until_ready(lds)
    print("KERNEL_OK")
</pallas_src>

<mosaic_0001>
module attributes {stable_mosaic.version = 11 : i64} {
  func.func @_vat_kernel(%arg0: i32, %arg1: memref<8x1024xf32, #tpu.memory_space<vmem>>, %arg2: memref<8x1024xf32, #tpu.memory_space<vmem>>, %arg3: memref<1024x128xbf16, #tpu.memory_space<vmem>>, %arg4: memref<128x1024xbf16, #tpu.memory_space<vmem>>, %arg5: memref<1x128xf32, #tpu.memory_space<vmem>>, %arg6: memref<1x1xf32, #tpu.memory_space<smem>>) attributes {dimension_semantics = [#tpu.dimension_semantics<arbitrary>], iteration_bounds = array<i64: 1>, scalar_prefetch = 0 : i64, scratch_operands = 0 : i64, tpu.core_type = #tpu.core_type<tc>, window_params = [{transform_indices = @transform_0, window_bounds = array<i64: 8, 1024>}, {transform_indices = @transform_1, window_bounds = array<i64: 8, 1024>}, {pipeline_mode = #tpu.pipeline_mode<synchronous>, transform_indices = @transform_2, window_bounds = array<i64: 1024, 128>}, {pipeline_mode = #tpu.pipeline_mode<synchronous>, transform_indices = @transform_3, window_bounds = array<i64: 128, 1024>}, {pipeline_mode = #tpu.pipeline_mode<synchronous>, transform_indices = @transform_4, window_bounds = array<i64: 1, 128>}, {transform_indices = @transform_5, window_bounds = array<i64: 1, 1>}]} {
    %c0 = arith.constant 0 : index
    %c0_0 = arith.constant 0 : index
    %0 = vector.load %arg1[%c0, %c0_0] : memref<8x1024xf32, #tpu.memory_space<vmem>>, vector<8x1024xf32>
    %c0_1 = arith.constant 0 : index
    %c0_2 = arith.constant 0 : index
    %1 = vector.load %arg3[%c0_1, %c0_2] : memref<1024x128xbf16, #tpu.memory_space<vmem>>, vector<1024x128xbf16>
    %c0_3 = arith.constant 0 : index
    %c0_4 = arith.constant 0 : index
    %2 = vector.load %arg4[%c0_3, %c0_4] : memref<128x1024xbf16, #tpu.memory_space<vmem>>, vector<128x1024xbf16>
    %c0_5 = arith.constant 0 : index
    %c0_6 = arith.constant 0 : index
    %3 = vector.load %arg5[%c0_5, %c0_6] : memref<1x128xf32, #tpu.memory_space<vmem>>, vector<1x128xf32>
    %4 = vector.shape_cast %3 : vector<1x128xf32> to vector<1x128xf32>
    %5 = vector.broadcast %4 : vector<1x128xf32> to vector<8x128xf32>
    %6 = arith.truncf %0 : vector<8x1024xf32> to vector<8x1024xbf16>
    %cst = arith.constant dense<0.000000e+00> : vector<8x128xf32>
    %7 = tpu.matmul %6, %1, %cst {dimension_numbers = #tpu.dot_dimension_numbers<[1], [0], [0], [1], [0, 0, 1, 1], [], []>} : vector<8x1024xbf16>, vector<1024x128xbf16>, vector<8x128xf32> -> vector<8x128xf32>
    %8 = arith.addf %7, %5 : vector<8x128xf32>
    %cst_7 = arith.constant dense<0xFF800000> : vector<8xf32>
    %9 = vector.multi_reduction <maximumf>, %8, %cst_7 [1] : vector<8x128xf32> to vector<8xf32>
    %10 = vector.shape_cast %9 : vector<8xf32> to vector<8x1xf32>
    %11 = vector.broadcast %10 : vector<8x1xf32> to vector<8x128xf32>
    %12 = arith.subf %8, %11 : vector<8x128xf32>
    %13 = math.exp %12 : vector<8x128xf32>
    %cst_8 = arith.constant dense<0.000000e+00> : vector<8xf32>
    %14 = vector.multi_reduction <add>, %13, %cst_8 [1] : vector<8x128xf32> to vector<8xf32>
    %15 = vector.shape_cast %14 : vector<8xf32> to vector<8x1xf32>
    %16 = math.log %15 : vector<8x1xf32>
    %17 = vector.broadcast %16 : vector<8x1xf32> to vector<8x128xf32>
    %18 = arith.subf %12, %17 : vector<8x128xf32>
    %19 = math.exp %18 : vector<8x128xf32>
    %c0_9 = arith.constant 0 : index
    %c0_10 = arith.constant 0 : index
    %20 = vector.load %arg2[%c0_9, %c0_10] : memref<8x1024xf32, #tpu.memory_space<vmem>>, vector<8x1024xf32>
    %21 = vector.extract_strided_slice %20 {offsets = [0, 0], sizes = [8, 256], strides = [1, 1]} : vector<8x1024xf32> to vector<8x256xf32>
    %22 = arith.mulf %21, %21 : vector<8x256xf32>
    %23 = vector.extract_strided_slice %20 {offsets = [0, 256], sizes = [8, 256], strides = [1, 1]} : vector<8x1024xf32> to vector<8x256xf32>
    %24 = arith.mulf %23, %23 : vector<8x256xf32>
    %25 = arith.addf %22, %24 : vector<8x256xf32>
    %26 = vector.extract_strided_slice %20 {offsets = [0, 512], sizes = [8, 256], strides = [1, 1]} : vector<8x1024xf32> to vector<8x256xf32>
    %27 = arith.mulf %26, %26 : vector<8x256xf32>
    %28 = arith.addf %25, %27 : vector<8x256xf32>
    %29 = vector.extract_strided_slice %20 {offsets = [0, 768], sizes = [8, 256], strides = [1, 1]} : vector<8x1024xf32> to vector<8x256xf32>
    %30 = arith.mulf %29, %29 : vector<8x256xf32>
    %31 = arith.addf %28, %30 : vector<8x256xf32>
    %32 = math.sqrt %31 : vector<8x256xf32>
    %cst_11 = arith.constant 9.99999993E-9 : f32
    %33 = vector.broadcast %cst_11 : f32 to vector<8x256xf32>
    %34 = arith.addf %32, %33 : vector<8x256xf32>
    %cst_12 = arith.constant 1.000000e+00 : f32
    %35 = vector.broadcast %cst_12 : f32 to vector<8x256xf32>
    %36 = arith.divf %35, %34 : vector<8x256xf32>
    %37 = tpu.concatenate %36, %36, %36, %36 in 1 : vector<8x256xf32>, vector<8x256xf32>, vector<8x256xf32>, vector<8x256xf32> -> vector<8x1024xf32>
    %38 = arith.mulf %20, %37 : vector<8x1024xf32>
    %c0_i32 = arith.constant 0 : i32
    %cst_13 = arith.constant 1.000000e+01 : f32
    %39 = vector.broadcast %cst_13 : f32 to vector<8x1024xf32>
    %40 = arith.mulf %39, %38 : vector<8x1024xf32>
    %41 = arith.addf %0, %40 : vector<8x1024xf32>
    %42 = arith.truncf %41 : vector<8x1024xf32> to vector<8x1024xbf16>
    %cst_14 = arith.constant dense<0.000000e+00> : vector<8x128xf32>
    %43 = tpu.matmul %42, %1, %cst_14 {dimension_numbers = #tpu.dot_dimension_numbers<[1], [0], [0], [1], [0, 0, 1, 1], [], []>} : vector<8x1024xbf16>, vector<1024x128xbf16>, vector<8x128xf32> -> vector<8x128xf32>
    %44 = arith.addf %43, %5 : vector<8x128xf32>
    %cst_15 = arith.constant dense<0xFF800000> : vector<8xf32>
    %45 = vector.multi_reduction <maximumf>, %44, %cst_15 [1] : vector<8x128xf32> to vector<8xf32>
    %46 = vector.shape_cast %45 : vector<8xf32> to vector<8x1xf32>
    %47 = vector.broadcast %46 : vector<8x1xf32> to vector<8x128xf32>
    %48 = arith.subf %44, %47 : vector<8x128xf32>
    %49 = math.exp %48 : vector<8x128xf32>
    %cst_16 = arith.constant dense<0.000000e+00> : vector<8xf32>
    %50 = vector.multi_reduction <add>, %49, %cst_16 [1] : vector<8x128xf32> to vector<8xf32>
    %51 = vector.shape_cast %50 : vector<8xf32> to vector<8x1xf32>
    %52 = math.log %51 : vector<8x1xf32>
    %53 = vector.broadcast %52 : vector<8x1xf32> to vector<8x128xf32>
    %54 = arith.subf %48, %53 : vector<8x128xf32>
    %55 = math.exp %54 : vector<8x128xf32>
    %56 = arith.subf %55, %19 : vector<8x128xf32>
    %57 = arith.truncf %56 : vector<8x128xf32> to vector<8x128xbf16>
    %cst_17 = arith.constant dense<0.000000e+00> : vector<8x1024xf32>
    %58 = tpu.matmul %57, %2, %cst_17 {dimension_numbers = #tpu.dot_dimension_numbers<[1], [0], [0], [1], [0, 0, 1, 1], [], []>} : vector<8x128xbf16>, vector<128x1024xbf16>, vector<8x1024xf32> -> vector<8x1024xf32>
    %59 = vector.extract_strided_slice %58 {offsets = [0, 0], sizes = [8, 256], strides = [1, 1]} : vector<8x1024xf32> to vector<8x256xf32>
    %60 = arith.mulf %59, %59 : vector<8x256xf32>
    %61 = vector.extract_strided_slice %58 {offsets = [0, 256], sizes = [8, 256], strides = [1, 1]} : vector<8x1024xf32> to vector<8x256xf32>
    %62 = arith.mulf %61, %61 : vector<8x256xf32>
    %63 = arith.addf %60, %62 : vector<8x256xf32>
    %64 = vector.extract_strided_slice %58 {offsets = [0, 512], sizes = [8, 256], strides = [1, 1]} : vector<8x1024xf32> to vector<8x256xf32>
    %65 = arith.mulf %64, %64 : vector<8x256xf32>
    %66 = arith.addf %63, %65 : vector<8x256xf32>
    %67 = vector.extract_strided_slice %58 {offsets = [0, 768], sizes = [8, 256], strides = [1, 1]} : vector<8x1024xf32> to vector<8x256xf32>
    %68 = arith.mulf %67, %67 : vector<8x256xf32>
    %69 = arith.addf %66, %68 : vector<8x256xf32>
    %70 = math.sqrt %69 : vector<8x256xf32>
    %cst_18 = arith.constant 9.99999993E-9 : f32
    %71 = vector.broadcast %cst_18 : f32 to vector<8x256xf32>
    %72 = arith.addf %70, %71 : vector<8x256xf32>
    %cst_19 = arith.constant 1.000000e+00 : f32
    %73 = vector.broadcast %cst_19 : f32 to vector<8x256xf32>
    %74 = arith.divf %73, %72 : vector<8x256xf32>
    %75 = tpu.concatenate %74, %74, %74, %74 in 1 : vector<8x256xf32>, vector<8x256xf32>, vector<8x256xf32>, vector<8x256xf32> -> vector<8x1024xf32>
    %76 = arith.mulf %58, %75 : vector<8x1024xf32>
    %c1_i32 = arith.constant 1 : i32
    %cst_20 = arith.constant 1.000000e+01 : f32
    %77 = vector.broadcast %cst_20 : f32 to vector<8x1024xf32>
    %78 = arith.mulf %77, %76 : vector<8x1024xf32>
    %79 = arith.addf %0, %78 : vector<8x1024xf32>
    %80 = arith.truncf %79 : vector<8x1024xf32> to vector<8x1024xbf16>
    %cst_21 = arith.constant dense<0.000000e+00> : vector<8x128xf32>
    %81 = tpu.matmul %80, %1, %cst_21 {dimension_numbers = #tpu.dot_dimension_numbers<[1], [0], [0], [1], [0, 0, 1, 1], [], []>} : vector<8x1024xbf16>, vector<1024x128xbf16>, vector<8x128xf32> -> vector<8x128xf32>
    %82 = arith.addf %81, %5 : vector<8x128xf32>
    %cst_22 = arith.constant dense<0xFF800000> : vector<8xf32>
    %83 = vector.multi_reduction <maximumf>, %82, %cst_22 [1] : vector<8x128xf32> to vector<8xf32>
    %84 = vector.shape_cast %83 : vector<8xf32> to vector<8x1xf32>
    %85 = vector.broadcast %84 : vector<8x1xf32> to vector<8x128xf32>
    %86 = arith.subf %82, %85 : vector<8x128xf32>
    %87 = math.exp %86 : vector<8x128xf32>
    %cst_23 = arith.constant dense<0.000000e+00> : vector<8xf32>
    %88 = vector.multi_reduction <add>, %87, %cst_23 [1] : vector<8x128xf32> to vector<8xf32>
    %89 = vector.shape_cast %88 : vector<8xf32> to vector<8x1xf32>
    %90 = math.log %89 : vector<8x1xf32>
    %91 = vector.broadcast %90 : vector<8x1xf32> to vector<8x128xf32>
    %92 = arith.subf %86, %91 : vector<8x128xf32>
    %93 = math.exp %92 : vector<8x128xf32>
    %94 = arith.subf %93, %19 : vector<8x128xf32>
    %95 = arith.truncf %94 : vector<8x128xf32> to vector<8x128xbf16>
    %cst_24 = arith.constant dense<0.000000e+00> : vector<8x1024xf32>
    %96 = tpu.matmul %95, %2, %cst_24 {dimension_numbers = #tpu.dot_dimension_numbers<[1], [0], [0], [1], [0, 0, 1, 1], [], []>} : vector<8x128xbf16>, vector<128x1024xbf16>, vector<8x1024xf32> -> vector<8x1024xf32>
    %97 = vector.extract_strided_slice %96 {offsets = [0, 0], sizes = [8, 256], strides = [1, 1]} : vector<8x1024xf32> to vector<8x256xf32>
    %98 = arith.mulf %97, %97 : vector<8x256xf32>
    %99 = vector.extract_strided_slice %96 {offsets = [0, 256], sizes = [8, 256], strides = [1, 1]} : vector<8x1024xf32> to vector<8x256xf32>
    %100 = arith.mulf %99, %99 : vector<8x256xf32>
    %101 = arith.addf %98, %100 : vector<8x256xf32>
    %102 = vector.extract_strided_slice %96 {offsets = [0, 512], sizes = [8, 256], strides = [1, 1]} : vector<8x1024xf32> to vector<8x256xf32>
    %103 = arith.mulf %102, %102 : vector<8x256xf32>
    %104 = arith.addf %101, %103 : vector<8x256xf32>
    %105 = vector.extract_strided_slice %96 {offsets = [0, 768], sizes = [8, 256], strides = [1, 1]} : vector<8x1024xf32> to vector<8x256xf32>
    %106 = arith.mulf %105, %105 : vector<8x256xf32>
    %107 = arith.addf %104, %106 : vector<8x256xf32>
    %108 = math.sqrt %107 : vector<8x256xf32>
    %cst_25 = arith.constant 9.99999993E-9 : f32
    %109 = vector.broadcast %cst_25 : f32 to vector<8x256xf32>
    %110 = arith.addf %108, %109 : vector<8x256xf32>
    %cst_26 = arith.constant 1.000000e+00 : f32
    %111 = vector.broadcast %cst_26 : f32 to vector<8x256xf32>
    %112 = arith.divf %111, %110 : vector<8x256xf32>
    %113 = tpu.concatenate %112, %112, %112, %112 in 1 : vector<8x256xf32>, vector<8x256xf32>, vector<8x256xf32>, vector<8x256xf32> -> vector<8x1024xf32>
    %114 = arith.mulf %96, %113 : vector<8x1024xf32>
    %cst_27 = arith.constant 1.000000e+00 : f32
    %115 = vector.broadcast %cst_27 : f32 to vector<8x1024xf32>
    %116 = arith.mulf %115, %114 : vector<8x1024xf32>
    %117 = arith.addf %0, %116 : vector<8x1024xf32>
    %118 = arith.truncf %117 : vector<8x1024xf32> to vector<8x1024xbf16>
    %cst_28 = arith.constant dense<0.000000e+00> : vector<8x128xf32>
    %119 = tpu.matmul %118, %1, %cst_28 {dimension_numbers = #tpu.dot_dimension_numbers<[1], [0], [0], [1], [0, 0, 1, 1], [], []>} : vector<8x1024xbf16>, vector<1024x128xbf16>, vector<8x128xf32> -> vector<8x128xf32>
    %120 = arith.addf %119, %5 : vector<8x128xf32>
    %cst_29 = arith.constant dense<0xFF800000> : vector<8xf32>
    %121 = vector.multi_reduction <maximumf>, %120, %cst_29 [1] : vector<8x128xf32> to vector<8xf32>
    %122 = vector.shape_cast %121 : vector<8xf32> to vector<8x1xf32>
    %123 = vector.broadcast %122 : vector<8x1xf32> to vector<8x128xf32>
    %124 = arith.subf %120, %123 : vector<8x128xf32>
    %125 = math.exp %124 : vector<8x128xf32>
    %cst_30 = arith.constant dense<0.000000e+00> : vector<8xf32>
    %126 = vector.multi_reduction <add>, %125, %cst_30 [1] : vector<8x128xf32> to vector<8xf32>
    %127 = vector.shape_cast %126 : vector<8xf32> to vector<8x1xf32>
    %128 = math.log %127 : vector<8x1xf32>
    %129 = vector.broadcast %128 : vector<8x1xf32> to vector<8x128xf32>
    %130 = arith.subf %124, %129 : vector<8x128xf32>
    %131 = arith.subf %18, %130 : vector<8x128xf32>
    %132 = arith.mulf %19, %131 : vector<8x128xf32>
    %cst_31 = arith.constant dense<0.000000e+00> : vector<8xf32>
    %133 = vector.multi_reduction <add>, %132, %cst_31 [1] : vector<8x128xf32> to vector<8xf32>
    %134 = vector.shape_cast %133 : vector<8xf32> to vector<8x1xf32>
    %c8_i32 = arith.constant 8 : i32
    %135 = arith.muli %arg0, %c8_i32 : i32
    %136 = tpu.iota {dimensions = array<i32: 0>} : vector<8x1xi32>
    %137 = vector.broadcast %135 : i32 to vector<8x1xi32>
    %138 = arith.addi %137, %136 : vector<8x1xi32>
    %c2_i32 = arith.constant 2 : i32
    %139 = vector.broadcast %c2_i32 : i32 to vector<8x1xi32>
    %140 = arith.cmpi slt, %138, %139 : vector<8x1xi32>
    %cst_32 = arith.constant 0.000000e+00 : f32
    %141 = vector.broadcast %cst_32 : f32 to vector<8x1xf32>
    %142 = arith.select %140, %134, %141 : vector<8x1xi1>, vector<8x1xf32>
    %143 = vector.shape_cast %142 : vector<8x1xf32> to vector<1x8x1xf32>
    %cst_33 = arith.constant dense<0.000000e+00> : vector<1xf32>
    %144 = vector.multi_reduction <add>, %143, %cst_33 [1, 2] : vector<1x8x1xf32> to vector<1xf32>
    %145 = vector.shape_cast %144 : vector<1xf32> to vector<1x1x1xf32>
    %146 = vector.extract %145[0, 0, 0] : f32 from vector<1x1x1xf32>
    %cst_34 = arith.constant 5.000000e-01 : f32
    %147 = arith.mulf %146, %cst_34 : f32
    %c0_35 = arith.constant 0 : index
    %c0_36 = arith.constant 0 : index
    %148 = memref.load %arg6[%c0_35, %c0_36] : memref<1x1xf32, #tpu.memory_space<smem>>
    memref.store %147, %arg6[%c0_35, %c0_36] : memref<1x1xf32, #tpu.memory_space<smem>>
    return
  }
  func.func @transform_0(%arg0: i32) -> (i32, i32) {
    %c0_i32 = arith.constant 0 : i32
    %c0_i32_0 = arith.constant 0 : i32
    return %arg0, %c0_i32 : i32, i32
  }
  func.func @transform_1(%arg0: i32) -> (i32, i32) {
    %c0_i32 = arith.constant 0 : i32
    %c0_i32_0 = arith.constant 0 : i32
    return %arg0, %c0_i32 : i32, i32
  }
  func.func @transform_2(%arg0: i32) -> (i32, i32) {
    %c0_i32 = arith.constant 0 : i32
    %c0_i32_0 = arith.constant 0 : i32
    %c0_i32_1 = arith.constant 0 : i32
    return %c0_i32, %c0_i32_0 : i32, i32
  }
  func.func @transform_3(%arg0: i32) -> (i32, i32) {
    %c0_i32 = arith.constant 0 : i32
    %c0_i32_0 = arith.constant 0 : i32
    %c0_i32_1 = arith.constant 0 : i32
    return %c0_i32, %c0_i32_0 : i32, i32
  }
  func.func @transform_4(%arg0: i32) -> (i32, i32) {
    %c0_i32 = arith.constant 0 : i32
    %c0_i32_0 = arith.constant 0 : i32
    %c0_i32_1 = arith.constant 0 : i32
    return %c0_i32, %c0_i32_0 : i32, i32
  }
  func.func @transform_5(%arg0: i32) -> (i32, i32) {
    %c0_i32 = arith.constant 0 : i32
    %c0_i32_0 = arith.constant 0 : i32
    return %arg0, %c0_i32 : i32, i32
  }
}

</mosaic_0001>

<llo_original>
// kernel: tpu_custom_call.1
$region0: #{tpu_custom_call.1}
  #allocation0 [shape = 'u32[]', space=smem, size = 0x4, offset = 0x4, fixed_abs, tag = 'smem constant byte address 0x4 - core index']
  #allocation1 [shape = 'u32[72,128]{1,0:T(1,128)}', space=vmem, size = 0x9000, scoped, tag = 'internal scratch']
  %s0 = inlined_call_operand.hbm [shape: f32[8,1024], index: 0, kind: input, shape index: {}]
  %s1 = inlined_call_operand.hbm [shape: f32[8,1024], index: 1, kind: input, shape index: {}]
  %s2 = inlined_call_operand.hbm [shape: bf16[1024,128], index: 2, kind: input, shape index: {}]
  %s3 = inlined_call_operand.hbm [shape: bf16[128,1024], index: 3, kind: input, shape index: {}]
  %s4 = inlined_call_operand.vmem [shape: f32[1,128], index: 4, kind: input, shape index: {}]
  %s5 = inlined_call_operand.hbm [shape: f32[1,1], index: 5, kind: output, shape index: {}]
  %s6 = sld [smem:[#allocation0]]
  $region46: #{tpu_custom_call.1} parent=0
    _
  %s8 = ssub.s32 1, %s6
  %s9 = scalar_select 0, %s8, %s6
  $region1: #{tpu_custom_call.1} parent=0
    #allocation2 [shape = 'u8[32768]{0}', space=vmem, size = 0x8000, scoped, tag = 'input window, operand 0, single buffered']
    #allocation3 [shape = 's32[1]{0}', space=sflag, size = 0x4, scoped, tag = 'scoped memory for tpu_custom_call.1']
    #allocation4 [shape = 's32[1]{0}', space=sflag, size = 0x4, scoped, tag = 'scoped memory for tpu_custom_call.1']
    #allocation5 [shape = 'u8[32768]{0}', space=vmem, size = 0x8000, scoped, tag = 'input window, operand 1, single buffered']
    #allocation6 [shape = 's32[1]{0}', space=sflag, size = 0x4, scoped, tag = 'scoped memory for tpu_custom_call.1']
    #allocation7 [shape = 'u8[262144]{0}', space=vmem, size = 0x40000, scoped, tag = 'input window, operand 2, single buffered']
    #allocation8 [shape = 'u8[262144]{0}', space=vmem, size = 0x40000, scoped, tag = 'input window, operand 3, single buffered']
    #allocation9 [shape = 's32[1]{0}', space=sflag, size = 0x4, scoped, tag = 'scoped memory for tpu_custom_call.1']
    #allocation10 [shape = 'u8[512]{0}', space=smem, size = 0x200, scoped, tag = 'output window, operand 0, single buffered']
    %10 = vsyncpa [#allocation3], 0
    %11 = vsyncpa [#allocation6], 0
    %12 = vsyncpa [#allocation9], 0
    %13 = vsyncpa [#allocation4], 0
    // Predicated region
    $region2: #{tpu_custom_call.1} parent=1 // pred_check
      _
    $region3: #{tpu_custom_call.1} parent=1 // pred_check_branch
      %15 = sbr.rel (0) target = $region5
    $region4: #{tpu_custom_call.1} parent=1 // pred_region
      %17 = vsyncadd [#allocation3], 0
      %s19 = sshll.u32 %s0, 4
      %s20 = int_to_ptr.hbm [resolvable:$true] %s19
      %s21 = sshll.u32 [#allocation2], 4
      %s22 = int_to_ptr.vmem [resolvable:$true] %s21
      %24 = dma.hbm_to_vmem [thread:$0]  %s20, 1024, %s22, [#allocation3]
    $region5: #{tpu_custom_call.1} parent=1 // pred_fallthru
      _
    // Predicated region
    $region6: #{tpu_custom_call.1} parent=1 // pred_check
      _
    $region7: #{tpu_custom_call.1} parent=1 // pred_check_branch
      %26 = sbr.rel (0) target = $region9
    $region8: #{tpu_custom_call.1} parent=1 // pred_region
      %28 = vsyncadd [#allocation6], 0
      %s30 = sshll.u32 %s1, 4
      %s31 = int_to_ptr.hbm [resolvable:$true] %s30
      %s32 = sshll.u32 [#allocation5], 4
      %s33 = int_to_ptr.vmem [resolvable:$true] %s32
      %35 = dma.hbm_to_vmem [thread:$0]  %s31, 1024, %s33, [#allocation6]
    $region9: #{tpu_custom_call.1} parent=1 // pred_fallthru
      _
    // Predicated region
    $region10: #{tpu_custom_call.1} parent=1 // pred_check
      _
    $region11: #{tpu_custom_call.1} parent=1 // pred_check_branch
      %37 = sbr.rel (0) target = $region13
    $region12: #{tpu_custom_call.1} parent=1 // pred_region
      %39 = vsyncadd [#allocation6], 0
      %s40 = sshll.u32 %s2, 4
      %s41 = int_to_ptr.hbm [resolvable:$true] %s40
      %s42 = sshll.u32 [#allocation7], 4
      %s43 = int_to_ptr.vmem [resolvable:$true] %s42
      %48 = dma.hbm_to_vmem [thread:$0]  %s41, 8192, %s43, [#allocation6], 64, 64, 4
    $region13: #{tpu_custom_call.1} parent=1 // pred_fallthru
      _
    // Predicated region
    $region14: #{tpu_custom_call.1} parent=1 // pred_check
      _
    $region15: #{tpu_custom_call.1} parent=1 // pred_check_branch
      %50 = sbr.rel (0) target = $region17
    $region16: #{tpu_custom_call.1} parent=1 // pred_region
      %52 = vsyncadd [#allocation9], 0
      %s53 = sshll.u32 %s3, 4
      %s54 = int_to_ptr.hbm [resolvable:$true] %s53
      %s55 = sshll.u32 [#allocation8], 4
      %s56 = int_to_ptr.vmem [resolvable:$true] %s55
      %61 = dma.hbm_to_vmem [thread:$0]  %s54, 8192, %s56, [#allocation9], 512, 512, 32
    $region17: #{tpu_custom_call.1} parent=1 // pred_fallthru
      _
    // Predicated region
    $region18: #{tpu_custom_call.1} parent=1 // pred_check
      _
    $region19: #{tpu_custom_call.1} parent=1 // pred_check_branch
      %63 = sbr.rel (0) target = $region21
    $region20: #{tpu_custom_call.1} parent=1 // pred_region
      _
    $region21: #{tpu_custom_call.1} parent=1 // pred_fallthru
      _
    // Predicated region
    $region22: #{tpu_custom_call.1} parent=1 // pred_check
      _
    $region23: #{tpu_custom_call.1} parent=1 // pred_check_branch
      %65 = sbr.rel (0) target = $region25
    $region24: #{tpu_custom_call.1} parent=1 // pred_region
      %67 = dma.done [#allocation3], 1024
    $region25: #{tpu_custom_call.1} parent=1 // pred_fallthru
      _
    // Predicated region
    $region26: #{tpu_custom_call.1} parent=1 // pred_check
      _
    $region27: #{tpu_custom_call.1} parent=1 // pred_check_branch
      %69 = sbr.rel (0) target = $region29
    $region28: #{tpu_custom_call.1} parent=1 // pred_region
      %71 = dma.done [#allocation6], 1024
    $region29: #{tpu_custom_call.1} parent=1 // pred_fallthru
      _
    // Predicated region
    $region30: #{tpu_custom_call.1} parent=1 // pred_check
      _
    $region31: #{tpu_custom_call.1} parent=1 // pred_check_branch
      %73 = sbr.rel (0) target = $region33
    $region32: #{tpu_custom_call.1} parent=1 // pred_region
      %75 = dma.done [#allocation6], 8192
    $region33: #{tpu_custom_call.1} parent=1 // pred_fallthru
      _
    // Predicated region
    $region34: #{tpu_custom_call.1} parent=1 // pred_check
      _
    $region35: #{tpu_custom_call.1} parent=1 // pred_check_branch
      %77 = sbr.rel (0) target = $region37
    $region36: #{tpu_custom_call.1} parent=1 // pred_region
      %79 = dma.done [#allocation9], 8192
    $region37: #{tpu_custom_call.1} parent=1 // pred_fallthru
      _
    %v80 = vld [vmem:[#allocation2] sm:$0xff]
    %v81 = vld [vmem:[#allocation2 + $0x8] sm:$0xff]
    %v82 = vld [vmem:[#allocation2 + $0x10] sm:$0xff]
    %v83 = vld [vmem:[#allocation2 + $0x18] sm:$0xff]
    %v84 = vld [vmem:[#allocation2 + $0x20] sm:$0xff]
    %v85 = vld [vmem:[#allocation2 + $0x28] sm:$0xff]
    %v86 = vld [vmem:[#allocation2 + $0x30] sm:$0xff]
    %v87 = vld [vmem:[#allocation2 + $0x38] sm:$0xff]
    %v88 = vld [vmem:[#allocation7] sm:$0xf]
    %v89 = vld [vmem:[#allocation7 + $0x4] sm:$0xf]
    %v90 = vld [vmem:[#allocation7 + $0x8] sm:$0xf]
    %v91 = vld [vmem:[#allocation7 + $0xc] sm:$0xf]
    %v92 = vld [vmem:[#allocation7 + $0x10] sm:$0xf]
    %v93 = vld [vmem:[#allocation7 + $0x14] sm:$0xf]
    %v94 = vld [vmem:[#allocation7 + $0x18] sm:$0xf]
    %v95 = vld [vmem:[#allocation7 + $0x1c] sm:$0xf]
    %v96 = vld [vmem:[#allocation7 + $0x20] sm:$0xf]
    %v97 = vld [vmem:[#allocation7 + $0x24] sm:$0xf]
    %v98 = vld [vmem:[#allocation7 + $0x28] sm:$0xf]
    %v99 = vld [vmem:[#allocation7 + $0x2c] sm:$0xf]
    %v100 = vld [vmem:[#allocation7 + $0x30] sm:$0xf]
    %v101 = vld [vmem:[#allocation7 + $0x34] sm:$0xf]
    %v102 = vld [vmem:[#allocation7 + $0x38] sm:$0xf]
    %v103 = vld [vmem:[#allocation7 + $0x3c] sm:$0xf]
    %v104 = vld [vmem:[#allocation7 + $0x40] sm:$0xf]
    %v105 = vld [vmem:[#allocation7 + $0x44] sm:$0xf]
    %v106 = vld [vmem:[#allocation7 + $0x48] sm:$0xf]
    %v107 = vld [vmem:[#allocation7 + $0x4c] sm:$0xf]
    %v108 = vld [vmem:[#allocation7 + $0x50] sm:$0xf]
    %v109 = vld [vmem:[#allocation7 + $0x54] sm:$0xf]
    %v110 = vld [vmem:[#allocation7 + $0x58] sm:$0xf]
    %v111 = vld [vmem:[#allocation7 + $0x5c] sm:$0xf]
    %v112 = vld [vmem:[#allocation7 + $0x60] sm:$0xf]
    %v113 = vld [vmem:[#allocation7 + $0x64] sm:$0xf]
    %v114 = vld [vmem:[#allocation7 + $0x68] sm:$0xf]
    %v115 = vld [vmem:[#allocation7 + $0x6c] sm:$0xf]
    %v116 = vld [vmem:[#allocation7 + $0x70] sm:$0xf]
    %v117 = vld [vmem:[#allocation7 + $0x74] sm:$0xf]
    %v118 = vld [vmem:[#allocation7 + $0x78] sm:$0xf]
    %v119 = vld [vmem:[#allocation7 + $0x7c] sm:$0xf]
    %v120 = vld [vmem:[#allocation7 + $0x80] sm:$0xf]
    %v121 = vld [vmem:[#allocation7 + $0x84] sm:$0xf]
    %v122 = vld [vmem:[#allocation7 + $0x88] sm:$0xf]
    %v123 = vld [vmem:[#allocation7 + $0x8c] sm:$0xf]
    %v124 = vld [vmem:[#allocation7 + $0x90] sm:$0xf]
    %v125 = vld [vmem:[#allocation7 + $0x94] sm:$0xf]
    %v126 = vld [vmem:[#allocation7 + $0x98] sm:$0xf]
    %v127 = vld [vmem:[#allocation7 + $0x9c] sm:$0xf]
    %v128 = vld [vmem:[#allocation7 + $0xa0] sm:$0xf]
    %v129 = vld [vmem:[#allocation7 + $0xa4] sm:$0xf]
    %v130 = vld [vmem:[#allocation7 + $0xa8] sm:$0xf]
    %v131 = vld [vmem:[#allocation7 + $0xac] sm:$0xf]
    %v132 = vld [vmem:[#allocation7 + $0xb0] sm:$0xf]
    %v133 = vld [vmem:[#allocation7 + $0xb4] sm:$0xf]
    %v134 = vld [vmem:[#allocation7 + $0xb8] sm:$0xf]
    %v135 = vld [vmem:[#allocation7 + $0xbc] sm:$0xf]
    %v136 = vld [vmem:[#allocation7 + $0xc0] sm:$0xf]
    %v137 = vld [vmem:[#allocation7 + $0xc4] sm:$0xf]
    %v138 = vld [vmem:[#allocation7 + $0xc8] sm:$0xf]
    %v139 = vld [vmem:[#allocation7 + $0xcc] sm:$0xf]
    %v140 = vld [vmem:[#allocation7 + $0xd0] sm:$0xf]
    %v141 = vld [vmem:[#allocation7 + $0xd4] sm:$0xf]
    %v142 = vld [vmem:[#allocation7 + $0xd8] sm:$0xf]
    %v143 = vld [vmem:[#allocation7 + $0xdc] sm:$0xf]
    %v144 = vld [vmem:[#allocation7 + $0xe0] sm:$0xf]
    %v145 = vld [vmem:[#allocation7 + $0xe4] sm:$0xf]
    %v146 = vld [vmem:[#allocation7 + $0xe8] sm:$0xf]
    %v147 = vld [vmem:[#allocation7 + $0xec] sm:$0xf]
    %v148 = vld [vmem:[#allocation7 + $0xf0] sm:$0xf]
    %v149 = vld [vmem:[#allocation7 + $0xf4] sm:$0xf]
    %v150 = vld [vmem:[#allocation7 + $0xf8] sm:$0xf]
    %v151 = vld [vmem:[#allocation7 + $0xfc] sm:$0xf]
    %v152 = vld [vmem:[#allocation7 + $0x100] sm:$0xf]
    %v153 = vld [vmem:[#allocation7 + $0x104] sm:$0xf]
    %v154 = vld [vmem:[#allocation7 + $0x108] sm:$0xf]
    %v155 = vld [vmem:[#allocation7 + $0x10c] sm:$0xf]
    %v156 = vld [vmem:[#allocation7 + $0x110] sm:$0xf]
    %v157 = vld [vmem:[#allocation7 + $0x114] sm:$0xf]
    %v158 = vld [vmem:[#allocation7 + $0x118] sm:$0xf]
    %v159 = vld [vmem:[#allocation7 + $0x11c] sm:$0xf]
    %v160 = vld [vmem:[#allocation7 + $0x120] sm:$0xf]
    %v161 = vld [vmem:[#allocation7 + $0x124] sm:$0xf]
    %v162 = vld [vmem:[#allocation7 + $0x128] sm:$0xf]
    %v163 = vld [vmem:[#allocation7 + $0x12c] sm:$0xf]
    %v164 = vld [vmem:[#allocation7 + $0x130] sm:$0xf]
    %v165 = vld [vmem:[#allocation7 + $0x134] sm:$0xf]
    %v166 = vld [vmem:[#allocation7 + $0x138] sm:$0xf]
    %v167 = vld [vmem:[#allocation7 + $0x13c] sm:$0xf]
    %v168 = vld [vmem:[#allocation7 + $0x140] sm:$0xf]
    %v169 = vld [vmem:[#allocation7 + $0x144] sm:$0xf]
    %v170 = vld [vmem:[#allocation7 + $0x148] sm:$0xf]
    %v171 = vld [vmem:[#allocation7 + $0x14c] sm:$0xf]
    %v172 = vld [vmem:[#allocation7 + $0x150] sm:$0xf]
    %v173 = vld [vmem:[#allocation7 + $0x154] sm:$0xf]
    %v174 = vld [vmem:[#allocation7 + $0x158] sm:$0xf]
    %v175 = vld [vmem:[#allocation7 + $0x15c] sm:$0xf]
    %v176 = vld [vmem:[#allocation7 + $0x160] sm:$0xf]
    %v177 = vld [vmem:[#allocation7 + $0x164] sm:$0xf]
    %v178 = vld [vmem:[#allocation7 + $0x168] sm:$0xf]
    %v179 = vld [vmem:[#allocation7 + $0x16c] sm:$0xf]
    %v180 = vld [vmem:[#allocation7 + $0x170] sm:$0xf]
    %v181 = vld [vmem:[#allocation7 + $0x174] sm:$0xf]
    %v182 = vld [vmem:[#allocation7 + $0x178] sm:$0xf]
    %v183 = vld [vmem:[#allocation7 + $0x17c] sm:$0xf]
    %v184 = vld [vmem:[#allocation7 + $0x180] sm:$0xf]
    %v185 = vld [vmem:[#allocation7 + $0x184] sm:$0xf]
    %v186 = vld [vmem:[#allocation7 + $0x188] sm:$0xf]
    %v187 = vld [vmem:[#allocation7 + $0x18c] sm:$0xf]
    %v188 = vld [vmem:[#allocation7 + $0x190] sm:$0xf]
    %v189 = vld [vmem:[#allocation7 + $0x194] sm:$0xf]
    %v190 = vld [vmem:[#allocation7 + $0x198] sm:$0xf]
    %v191 = vld [vmem:[#allocation7 + $0x19c] sm:$0xf]
    %v192 = vld [vmem:[#allocation7 + $0x1a0] sm:$0xf]
    %v193 = vld [vmem:[#allocation7 + $0x1a4] sm:$0xf]
    %v194 = vld [vmem:[#allocation7 + $0x1a8] sm:$0xf]
    %v195 = vld [vmem:[#allocation7 + $0x1ac] sm:$0xf]
    %v196 = vld [vmem:[#allocation7 + $0x1b0] sm:$0xf]
    %v197 = vld [vmem:[#allocation7 + $0x1b4] sm:$0xf]
    %v198 = vld [vmem:[#allocation7 + $0x1b8] sm:$0xf]
    %v199 = vld [vmem:[#allocation7 + $0x1bc] sm:$0xf]
    %v200 = vld [vmem:[#allocation7 + $0x1c0] sm:$0xf]
    %v201 = vld [vmem:[#allocation7 + $0x1c4] sm:$0xf]
    %v202 = vld [vmem:[#allocation7 + $0x1c8] sm:$0xf]
    %v203 = vld [vmem:[#allocation7 + $0x1cc] sm:$0xf]
    %v204 = vld [vmem:[#allocation7 + $0x1d0] sm:$0xf]
    %v205 = vld [vmem:[#allocation7 + $0x1d4] sm:$0xf]
    %v206 = vld [vmem:[#allocation7 + $0x1d8] sm:$0xf]
    %v207 = vld [vmem:[#allocation7 + $0x1dc] sm:$0xf]
    %v208 = vld [vmem:[#allocation7 + $0x1e0] sm:$0xf]
    %v209 = vld [vmem:[#allocation7 + $0x1e4] sm:$0xf]
    %v210 = vld [vmem:[#allocation7 + $0x1e8] sm:$0xf]
    %v211 = vld [vmem:[#allocation7 + $0x1ec] sm:$0xf]
    %v212 = vld [vmem:[#allocation7 + $0x1f0] sm:$0xf]
    %v213 = vld [vmem:[#allocation7 + $0x1f4] sm:$0xf]
    %v214 = vld [vmem:[#allocation7 + $0x1f8] sm:$0xf]
    %v215 = vld [vmem:[#allocation7 + $0x1fc] sm:$0xf]
    %v216 = vld [vmem:[#allocation8] sm:$0xff]
    %v217 = vld [vmem:[#allocation8 + $0x8] sm:$0xff]
    %v218 = vld [vmem:[#allocation8 + $0x10] sm:$0xff]
    %v219 = vld [vmem:[#allocation8 + $0x18] sm:$0xff]
    %v220 = vld [vmem:[#allocation8 + $0x20] sm:$0xff]
    %v221 = vld [vmem:[#allocation8 + $0x28] sm:$0xff]
    %v222 = vld [vmem:[#allocation8 + $0x30] sm:$0xff]
    %v223 = vld [vmem:[#allocation8 + $0x38] sm:$0xff]
    %v224 = vld [vmem:[#allocation8 + $0x40] sm:$0xff]
    %v225 = vld [vmem:[#allocation8 + $0x48] sm:$0xff]
    %v226 = vld [vmem:[#allocation8 + $0x50] sm:$0xff]
    %v227 = vld [vmem:[#allocation8 + $0x58] sm:$0xff]
    %v228 = vld [vmem:[#allocation8 + $0x60] sm:$0xff]
    %v229 = vld [vmem:[#allocation8 + $0x68] sm:$0xff]
    %v230 = vld [vmem:[#allocation8 + $0x70] sm:$0xff]
    %v231 = vld [vmem:[#allocation8 + $0x78] sm:$0xff]
    %v232 = vld [vmem:[#allocation8 + $0x80] sm:$0xff]
    %v233 = vld [vmem:[#allocation8 + $0x88] sm:$0xff]
    %v234 = vld [vmem:[#allocation8 + $0x90] sm:$0xff]
    %v235 = vld [vmem:[#allocation8 + $0x98] sm:$0xff]
    %v236 = vld [vmem:[#allocation8 + $0xa0] sm:$0xff]
    %v237 = vld [vmem:[#allocation8 + $0xa8] sm:$0xff]
    %v238 = vld [vmem:[#allocation8 + $0xb0] sm:$0xff]
    %v239 = vld [vmem:[#allocation8 + $0xb8] sm:$0xff]
    %v240 = vld [vmem:[#allocation8 + $0xc0] sm:$0xff]
    %v241 = vld [vmem:[#allocation8 + $0xc8] sm:$0xff]
    %v242 = vld [vmem:[#allocation8 + $0xd0] sm:$0xff]
    %v243 = vld [vmem:[#allocation8 + $0xd8] sm:$0xff]
    %v244 = vld [vmem:[#allocation8 + $0xe0] sm:$0xff]
    %v245 = vld [vmem:[#allocation8 + $0xe8] sm:$0xff]
    %v246 = vld [vmem:[#allocation8 + $0xf0] sm:$0xff]
    %v247 = vld [vmem:[#allocation8 + $0xf8] sm:$0xff]
    %v248 = vld [vmem:[#allocation8 + $0x100] sm:$0xff]
    %v249 = vld [vmem:[#allocation8 + $0x108] sm:$0xff]
    %v250 = vld [vmem:[#allocation8 + $0x110] sm:$0xff]
    %v251 = vld [vmem:[#allocation8 + $0x118] sm:$0xff]
    %v252 = vld [vmem:[#allocation8 + $0x120] sm:$0xff]
    %v253 = vld [vmem:[#allocation8 + $0x128] sm:$0xff]
    %v254 = vld [vmem:[#allocation8 + $0x130] sm:$0xff]
    %v255 = vld [vmem:[#allocation8 + $0x138] sm:$0xff]
    %v256 = vld [vmem:[#allocation8 + $0x140] sm:$0xff]
    %v257 = vld [vmem:[#allocation8 + $0x148] sm:$0xff]
    %v258 = vld [vmem:[#allocation8 + $0x150] sm:$0xff]
    %v259 = vld [vmem:[#allocation8 + $0x158] sm:$0xff]
    %v260 = vld [vmem:[#allocation8 + $0x160] sm:$0xff]
    %v261 = vld [vmem:[#allocation8 + $0x168] sm:$0xff]
    %v262 = vld [vmem:[#allocation8 + $0x170] sm:$0xff]
    %v263 = vld [vmem:[#allocation8 + $0x178] sm:$0xff]
    %v264 = vld [vmem:[#allocation8 + $0x180] sm:$0xff]
    %v265 = vld [vmem:[#allocation8 + $0x188] sm:$0xff]
    %v266 = vld [vmem:[#allocation8 + $0x190] sm:$0xff]
    %v267 = vld [vmem:[#allocation8 + $0x198] sm:$0xff]
    %v268 = vld [vmem:[#allocation8 + $0x1a0] sm:$0xff]
    %v269 = vld [vmem:[#allocation8 + $0x1a8] sm:$0xff]
    %v270 = vld [vmem:[#allocation8 + $0x1b0] sm:$0xff]
    %v271 = vld [vmem:[#allocation8 + $0x1b8] sm:$0xff]
    %v272 = vld [vmem:[#allocation8 + $0x1c0] sm:$0xff]
    %v273 = vld [vmem:[#allocation8 + $0x1c8] sm:$0xff]
    %v274 = vld [vmem:[#allocation8 + $0x1d0] sm:$0xff]
    %v275 = vld [vmem:[#allocation8 + $0x1d8] sm:$0xff]
    %v276 = vld [vmem:[#allocation8 + $0x1e0] sm:$0xff]
    %v277 = vld [vmem:[#allocation8 + $0x1e8] sm:$0xff]
    %v278 = vld [vmem:[#allocation8 + $0x1f0] sm:$0xff]
    %v279 = vld [vmem:[#allocation8 + $0x1f8] sm:$0xff]
    %v280 = vld [vmem:[%s4] sm:$0x1]
    %v282 = vperm.slane %v280, 0
    %v284 = vpack.c.bf16 %v80, %v80
    %v285 = vpack.c.bf16 %v81, %v81
    %v286 = vpack.c.bf16 %v82, %v82
    %v287 = vpack.c.bf16 %v83, %v83
    %v288 = vpack.c.bf16 %v84, %v84
    %v289 = vpack.c.bf16 %v85, %v85
    %v290 = vpack.c.bf16 %v86, %v86
    %v291 = vpack.c.bf16 %v87, %v87
    %v420 = vunpack.c.l.b16 %v88
    %v421 = vunpack.c.l.b16 %v89
    %v422 = vunpack.c.l.b16 %v90
    %v423 = vunpack.c.l.b16 %v91
    %v424 = vunpack.c.l.b16 %v92
    %v425 = vunpack.c.l.b16 %v93
    %v426 = vunpack.c.l.b16 %v94
    %v427 = vunpack.c.l.b16 %v95
    %v428 = vunpack.c.l.b16 %v96
    %v429 = vunpack.c.l.b16 %v97
    %v430 = vunpack.c.l.b16 %v98
    %v431 = vunpack.c.l.b16 %v99
    %v432 = vunpack.c.l.b16 %v100
    %v433 = vunpack.c.l.b16 %v101
    %v434 = vunpack.c.l.b16 %v102
    %v435 = vunpack.c.l.b16 %v103
    %v436 = vunpack.c.l.b16 %v104
    %v437 = vunpack.c.l.b16 %v105
    %v438 = vunpack.c.l.b16 %v106
    %v439 = vunpack.c.l.b16 %v107
    %v440 = vunpack.c.l.b16 %v108
    %v441 = vunpack.c.l.b16 %v109
    %v442 = vunpack.c.l.b16 %v110
    %v443 = vunpack.c.l.b16 %v111
    %v444 = vunpack.c.l.b16 %v112
    %v445 = vunpack.c.l.b16 %v113
    %v446 = vunpack.c.l.b16 %v114
    %v447 = vunpack.c.l.b16 %v115
    %v448 = vunpack.c.l.b16 %v116
    %v449 = vunpack.c.l.b16 %v117
    %v450 = vunpack.c.l.b16 %v118
    %v451 = vunpack.c.l.b16 %v119
    %v452 = vunpack.c.l.b16 %v120
    %v453 = vunpack.c.l.b16 %v121
    %v454 = vunpack.c.l.b16 %v122
    %v455 = vunpack.c.l.b16 %v123
    %v456 = vunpack.c.l.b16 %v124
    %v457 = vunpack.c.l.b16 %v125
    %v458 = vunpack.c.l.b16 %v126
    %v459 = vunpack.c.l.b16 %v127
    %v460 = vunpack.c.l.b16 %v128
    %v461 = vunpack.c.l.b16 %v129
    %v462 = vunpack.c.l.b16 %v130
    %v463 = vunpack.c.l.b16 %v131
    %v464 = vunpack.c.l.b16 %v132
    %v465 = vunpack.c.l.b16 %v133
    %v466 = vunpack.c.l.b16 %v134
    %v467 = vunpack.c.l.b16 %v135
    %v468 = vunpack.c.l.b16 %v136
    %v469 = vunpack.c.l.b16 %v137
    %v470 = vunpack.c.l.b16 %v138
    %v471 = vunpack.c.l.b16 %v139
    %v472 = vunpack.c.l.b16 %v140
    %v473 = vunpack.c.l.b16 %v141
    %v474 = vunpack.c.l.b16 %v142
    %v475 = vunpack.c.l.b16 %v143
    %v476 = vunpack.c.l.b16 %v144
    %v477 = vunpack.c.l.b16 %v145
    %v478 = vunpack.c.l.b16 %v146
    %v479 = vunpack.c.l.b16 %v147
    %v480 = vunpack.c.l.b16 %v148
    %v481 = vunpack.c.l.b16 %v149
    %v482 = vunpack.c.l.b16 %v150
    %v483 = vunpack.c.l.b16 %v151
    %v484 = vunpack.c.l.b16 %v152
    %v485 = vunpack.c.l.b16 %v153
    %v486 = vunpack.c.l.b16 %v154
    %v487 = vunpack.c.l.b16 %v155
    %v488 = vunpack.c.l.b16 %v156
    %v489 = vunpack.c.l.b16 %v157
    %v490 = vunpack.c.l.b16 %v158
    %v491 = vunpack.c.l.b16 %v159
    %v492 = vunpack.c.l.b16 %v160
    %v493 = vunpack.c.l.b16 %v161
    %v494 = vunpack.c.l.b16 %v162
    %v495 = vunpack.c.l.b16 %v163
    %v496 = vunpack.c.l.b16 %v164
    %v497 = vunpack.c.l.b16 %v165
    %v498 = vunpack.c.l.b16 %v166
    %v499 = vunpack.c.l.b16 %v167
    %v500 = vunpack.c.l.b16 %v168
    %v501 = vunpack.c.l.b16 %v169
    %v502 = vunpack.c.l.b16 %v170
    %v503 = vunpack.c.l.b16 %v171
    %v504 = vunpack.c.l.b16 %v172
    %v505 = vunpack.c.l.b16 %v173
    %v506 = vunpack.c.l.b16 %v174
    %v507 = vunpack.c.l.b16 %v175
    %v508 = vunpack.c.l.b16 %v176
    %v509 = vunpack.c.l.b16 %v177
    %v510 = vunpack.c.l.b16 %v178
    %v511 = vunpack.c.l.b16 %v179
    %v512 = vunpack.c.l.b16 %v180
    %v513 = vunpack.c.l.b16 %v181
    %v514 = vunpack.c.l.b16 %v182
    %v515 = vunpack.c.l.b16 %v183
    %v516 = vunpack.c.l.b16 %v184
    %v517 = vunpack.c.l.b16 %v185
    %v518 = vunpack.c.l.b16 %v186
    %v519 = vunpack.c.l.b16 %v187
    %v520 = vunpack.c.l.b16 %v188
    %v521 = vunpack.c.l.b16 %v189
    %v522 = vunpack.c.l.b16 %v190
    %v523 = vunpack.c.l.b16 %v191
    %v524 = vunpack.c.l.b16 %v192
    %v525 = vunpack.c.l.b16 %v193
    %v526 = vunpack.c.l.b16 %v194
    %v527 = vunpack.c.l.b16 %v195
    %v528 = vunpack.c.l.b16 %v196
    %v529 = vunpack.c.l.b16 %v197
    %v530 = vunpack.c.l.b16 %v198
    %v531 = vunpack.c.l.b16 %v199
    %v532 = vunpack.c.l.b16 %v200
    %v533 = vunpack.c.l.b16 %v201
    %v534 = vunpack.c.l.b16 %v202
    %v535 = vunpack.c.l.b16 %v203
    %v536 = vunpack.c.l.b16 %v204
    %v537 = vunpack.c.l.b16 %v205
    %v538 = vunpack.c.l.b16 %v206
    %v539 = vunpack.c.l.b16 %v207
    %v540 = vunpack.c.l.b16 %v208
    %v541 = vunpack.c.l.b16 %v209
    %v542 = vunpack.c.l.b16 %v210
    %v543 = vunpack.c.l.b16 %v211
    %v544 = vunpack.c.l.b16 %v212
    %v545 = vunpack.c.l.b16 %v213
    %v546 = vunpack.c.l.b16 %v214
    %v547 = vunpack.c.l.b16 %v215
    %v548 = vpack.c.b16 %v421, %v420
    %v549 = vpack.c.b16 %v423, %v422
    %v550 = vpack.c.b16 %v425, %v424
    %v551 = vpack.c.b16 %v427, %v426
    %v552 = vpack.c.b16 %v429, %v428
    %v553 = vpack.c.b16 %v431, %v430
    %v554 = vpack.c.b16 %v433, %v432
    %v555 = vpack.c.b16 %v435, %v434
    %v556 = vpack.c.b16 %v437, %v436
    %v557 = vpack.c.b16 %v439, %v438
    %v558 = vpack.c.b16 %v441, %v440
    %v559 = vpack.c.b16 %v443, %v442
    %v560 = vpack.c.b16 %v445, %v444
    %v561 = vpack.c.b16 %v447, %v446
    %v562 = vpack.c.b16 %v449, %v448
    %v563 = vpack.c.b16 %v451, %v450
    %v564 = vpack.c.b16 %v453, %v452
    %v565 = vpack.c.b16 %v455, %v454
    %v566 = vpack.c.b16 %v457, %v456
    %v567 = vpack.c.b16 %v459, %v458
    %v568 = vpack.c.b16 %v461, %v460
    %v569 = vpack.c.b16 %v463, %v462
    %v570 = vpack.c.b16 %v465, %v464
    %v571 = vpack.c.b16 %v467, %v466
    %v572 = vpack.c.b16 %v469, %v468
    %v573 = vpack.c.b16 %v471, %v470
    %v574 = vpack.c.b16 %v473, %v472
    %v575 = vpack.c.b16 %v475, %v474
    %v576 = vpack.c.b16 %v477, %v476
    %v577 = vpack.c.b16 %v479, %v478
    %v578 = vpack.c.b16 %v481, %v480
    %v579 = vpack.c.b16 %v483, %v482
    %v580 = vpack.c.b16 %v485, %v484
    %v581 = vpack.c.b16 %v487, %v486
    %v582 = vpack.c.b16 %v489, %v488
    %v583 = vpack.c.b16 %v491, %v490
    %v584 = vpack.c.b16 %v493, %v492
    %v585 = vpack.c.b16 %v495, %v494
    %v586 = vpack.c.b16 %v497, %v496
    %v587 = vpack.c.b16 %v499, %v498
    %v588 = vpack.c.b16 %v501, %v500
    %v589 = vpack.c.b16 %v503, %v502
    %v590 = vpack.c.b16 %v505, %v504
    %v591 = vpack.c.b16 %v507, %v506
    %v592 = vpack.c.b16 %v509, %v508
    %v593 = vpack.c.b16 %v511, %v510
    %v594 = vpack.c.b16 %v513, %v512
    %v595 = vpack.c.b16 %v515, %v514
    %v596 = vpack.c.b16 %v517, %v516
    %v597 = vpack.c.b16 %v519, %v518
    %v598 = vpack.c.b16 %v521, %v520
    %v599 = vpack.c.b16 %v523, %v522
    %v600 = vpack.c.b16 %v525, %v524
    %v601 = vpack.c.b16 %v527, %v526
    %v602 = vpack.c.b16 %v529, %v528
    %v603 = vpack.c.b16 %v531, %v530
    %v604 = vpack.c.b16 %v533, %v532
    %v605 = vpack.c.b16 %v535, %v534
    %v606 = vpack.c.b16 %v537, %v536
    %v607 = vpack.c.b16 %v539, %v538
    %v608 = vpack.c.b16 %v541, %v540
    %v609 = vpack.c.b16 %v543, %v542
    %v610 = vpack.c.b16 %v545, %v544
    %v611 = vpack.c.b16 %v547, %v546
    %676 = vmatpush.bf16.msra.mxu0 %v555
    %677 = vmatpush.bf16.msra.mxu0 %v554
    %678 = vmatpush.bf16.msra.mxu0 %v553
    %679 = vmatpush.bf16.msra.mxu0 %v552
    %680 = vmatpush.bf16.msra.mxu0 %v551
    %681 = vmatpush.bf16.msra.mxu0 %v550
    %682 = vmatpush.bf16.msra.mxu0 %v549
    %683 = vmatpush.bf16.msra.mxu0 %v548
    %684 = vmatmul.bf16.gmra.mxu0 %v284
    %v685 = vpop.f32.mrf.mxu0
    %v686 = vadd.f32 %v282, %v685
    %v687 = vpop.f32.mrf.mxu0
    %688 = vdwg.mxu0
    %689 = vmatpush.bf16.msra.mxu0 %v563
    %690 = vmatpush.bf16.msra.mxu0 %v562
    %691 = vmatpush.bf16.msra.mxu0 %v561
    %692 = vmatpush.bf16.msra.mxu0 %v560
    %693 = vmatpush.bf16.msra.mxu0 %v559
    %694 = vmatpush.bf16.msra.mxu0 %v558
    %695 = vmatpush.bf16.msra.mxu0 %v557
    %696 = vmatpush.bf16.msra.mxu0 %v556
    %697 = vmatmul.bf16.gmra.mxu0 %v285
    %v698 = vpop.f32.mrf.mxu0
    %v699 = vadd.f32 %v686, %v698
    %v700 = vpop.f32.mrf.mxu0
    %701 = vdwg.mxu0
    %702 = vmatpush.bf16.msra.mxu0 %v571
    %703 = vmatpush.bf16.msra.mxu0 %v570
    %704 = vmatpush.bf16.msra.mxu0 %v569
    %705 = vmatpush.bf16.msra.mxu0 %v568
    %706 = vmatpush.bf16.msra.mxu0 %v567
    %707 = vmatpush.bf16.msra.mxu0 %v566
    %708 = vmatpush.bf16.msra.mxu0 %v565
    %709 = vmatpush.bf16.msra.mxu0 %v564
    %710 = vmatmul.bf16.gmra.mxu0 %v286
    %v711 = vpop.f32.mrf.mxu0
    %v712 = vadd.f32 %v699, %v711
    %v713 = vpop.f32.mrf.mxu0
    %714 = vdwg.mxu0
    %715 = vmatpush.bf16.msra.mxu0 %v579
    %716 = vmatpush.bf16.msra.mxu0 %v578
    %717 = vmatpush.bf16.msra.mxu0 %v577
    %718 = vmatpush.bf16.msra.mxu0 %v576
    %719 = vmatpush.bf16.msra.mxu0 %v575
    %720 = vmatpush.bf16.msra.mxu0 %v574
    %721 = vmatpush.bf16.msra.mxu0 %v573
    %722 = vmatpush.bf16.msra.mxu0 %v572
    %723 = vmatmul.bf16.gmra.mxu0 %v287
    %v724 = vpop.f32.mrf.mxu0
    %v725 = vadd.f32 %v712, %v724
    %v726 = vpop.f32.mrf.mxu0
    %727 = vdwg.mxu0
    %728 = vmatpush.bf16.msra.mxu0 %v587
    %729 = vmatpush.bf16.msra.mxu0 %v586
    %730 = vmatpush.bf16.msra.mxu0 %v585
    %731 = vmatpush.bf16.msra.mxu0 %v584
    %732 = vmatpush.bf16.msra.mxu0 %v583
    %733 = vmatpush.bf16.msra.mxu0 %v582
    %734 = vmatpush.bf16.msra.mxu0 %v581
    %735 = vmatpush.bf16.msra.mxu0 %v580
    %736 = vmatmul.bf16.gmra.mxu0 %v288
    %v737 = vpop.f32.mrf.mxu0
    %v738 = vadd.f32 %v725, %v737
    %v739 = vpop.f32.mrf.mxu0
    %740 = vdwg.mxu0
    %741 = vmatpush.bf16.msra.mxu0 %v595
    %742 = vmatpush.bf16.msra.mxu0 %v594
    %743 = vmatpush.bf16.msra.mxu0 %v593
    %744 = vmatpush.bf16.msra.mxu0 %v592
    %745 = vmatpush.bf16.msra.mxu0 %v591
    %746 = vmatpush.bf16.msra.mxu0 %v590
    %747 = vmatpush.bf16.msra.mxu0 %v589
    %748 = vmatpush.bf16.msra.mxu0 %v588
    %749 = vmatmul.bf16.gmra.mxu0 %v289
    %v750 = vpop.f32.mrf.mxu0
    %v751 = vadd.f32 %v738, %v750
    %v752 = vpop.f32.mrf.mxu0
    %753 = vdwg.mxu0
    %754 = vmatpush.bf16.msra.mxu0 %v603
    %755 = vmatpush.bf16.msra.mxu0 %v602
    %756 = vmatpush.bf16.msra.mxu0 %v601
    %757 = vmatpush.bf16.msra.mxu0 %v600
    %758 = vmatpush.bf16.msra.mxu0 %v599
    %759 = vmatpush.bf16.msra.mxu0 %v598
    %760 = vmatpush.bf16.msra.mxu0 %v597
    %761 = vmatpush.bf16.msra.mxu0 %v596
    %762 = vmatmul.bf16.gmra.mxu0 %v290
    %v763 = vpop.f32.mrf.mxu0
    %v764 = vadd.f32 %v751, %v763
    %v765 = vpop.f32.mrf.mxu0
    %766 = vdwg.mxu0
    %767 = vmatpush.bf16.msra.mxu0 %v611
    %768 = vmatpush.bf16.msra.mxu0 %v610
    %769 = vmatpush.bf16.msra.mxu0 %v609
    %770 = vmatpush.bf16.msra.mxu0 %v608
    %771 = vmatpush.bf16.msra.mxu0 %v607
    %772 = vmatpush.bf16.msra.mxu0 %v606
    %773 = vmatpush.bf16.msra.mxu0 %v605
    %774 = vmatpush.bf16.msra.mxu0 %v604
    %775 = vmatmul.bf16.gmra.mxu0 %v291
    %v776 = vpop.f32.mrf.mxu0
    %v777 = vadd.f32 %v764, %v776
    %v778 = vpop.f32.mrf.mxu0
    %779 = vdwg.mxu0
    %780 = vmax.xlane.f32.xlu0 %v777
    %v781 = vpop.xlane.xlu0 %780
    %v782 = vsub.f32 %v777, %v781
    %v783 = vmul.f32 %v782, 1.442695
    %v784 = vpow.pop %v783
    %785 = vadd.xlane.f32.xlu0 %v784
    %v786 = vpop.xlane.xlu0 %785
    %v787 = vlog2.pop %v786
    %v788 = vmul.f32 %v787, 0.6931472
    %v789 = vsub.f32 %v782, %v788
    %v790 = vmul.f32 %v789, 1.442695
    %v791 = vpow.pop %v790
    %v792 = vld [vmem:[#allocation5] sm:$0xff]
    %v793 = vld [vmem:[#allocation5 + $0x8] sm:$0xff]
    %v794 = vld [vmem:[#allocation5 + $0x10] sm:$0xff]
    %v795 = vld [vmem:[#allocation5 + $0x18] sm:$0xff]
    %v796 = vld [vmem:[#allocation5 + $0x20] sm:$0xff]
    %v797 = vld [vmem:[#allocation5 + $0x28] sm:$0xff]
    %v798 = vld [vmem:[#allocation5 + $0x30] sm:$0xff]
    %v799 = vld [vmem:[#allocation5 + $0x38] sm:$0xff]
    %v800 = vmul.f32 %v792, %v792
    %v801 = vmul.f32 %v793, %v793
    %v802 = vmul.f32 %v794, %v794
    %v803 = vmul.f32 %v795, %v795
    %v804 = vadd.f32 %v800, %v802
    %v805 = vadd.f32 %v801, %v803
    %v806 = vmul.f32 %v796, %v796
    %v807 = vmul.f32 %v797, %v797
    %v808 = vadd.f32 %v804, %v806
    %v809 = vadd.f32 %v805, %v807
    %v810 = vmul.f32 %v798, %v798
    %v811 = vmul.f32 %v799, %v799
    %v812 = vadd.f32 %v808, %v810
    %v813 = vadd.f32 %v809, %v811
    %v814 = vrsqrt.pop %v812
    %v815 = vmul.f32 %v814, %v812
    %v816 = vmul.f32 %v815, %v814
    %v817 = vmul.f32 0.5, %v816
    %v818 = vsub.f32 1.5, %v817
    %v819 = vmul.f32 %v814, %v818
    %v820 = vmul.f32 %v812, %v819
    %vm821 = vcmp.eq.f32.partialorder %v812, inf
    %v822 = vsel %vm821, %v812, %v820
    %vm823 = vcmp.eq.f32.partialorder %v812, 0.0
    %v824 = vand.u32 %v812, 2147483648
    %v825 = vsel %vm823, %v824, %v822
    %v826 = vrsqrt.pop %v813
    %v827 = vmul.f32 %v826, %v813
    %v828 = vmul.f32 %v827, %v826
    %v829 = vmul.f32 0.5, %v828
    %v830 = vsub.f32 1.5, %v829
    %v831 = vmul.f32 %v826, %v830
    %v832 = vmul.f32 %v813, %v831
    %vm833 = vcmp.eq.f32.partialorder %v813, inf
    %v834 = vsel %vm833, %v813, %v832
    %vm835 = vcmp.eq.f32.partialorder %v813, 0.0
    %v836 = vand.u32 %v813, 2147483648
    %v837 = vsel %vm835, %v836, %v834
    %v838 = vadd.f32 %v825, 1e-08
    %v839 = vadd.f32 %v837, 1e-08
    %v840 = vrcp.pop %v838
    %v841 = vmul.f32 %v838, %v840
    %v842 = vsub.f32 1.0, %v841
    %v843 = vmul.f32 %v840, %v842
    %v844 = vadd.f32 %v840, %v843
    %vm845 = vweird.f32 %v838
    %vm846 = vweird.f32 %v840
    %vm847 = vmor %vm845, %vm846
    %v848 = vsel %vm847, %v840, %v844
    %v849 = vand.u32 2147483647, %v838
    %vm850 = vcmp.eq.f32.partialorder %v849, 8.507059e+37
    %v851 = vand.u32 %v838, 2147483648
    %v852 = vor.u32 1.1754944e-38, %v851
    %v853 = vsel %vm850, %v852, %v848
    %v854 = vmul.f32 1.0, %v853
    %v855 = vrcp.pop %v839
    %v856 = vmul.f32 %v839, %v855
    %v857 = vsub.f32 1.0, %v856
    %v858 = vmul.f32 %v855, %v857
    %v859 = vadd.f32 %v855, %v858
    %vm860 = vweird.f32 %v839
    %vm861 = vweird.f32 %v855
    %vm862 = vmor %vm860, %vm861
    %v863 = vsel %vm862, %v855, %v859
    %v864 = vand.u32 2147483647, %v839
    %vm865 = vcmp.eq.f32.partialorder %v864, 8.507059e+37
    %v866 = vand.u32 %v839, 2147483648
    %v867 = vor.u32 1.1754944e-38, %v866
    %v868 = vsel %vm865, %v867, %v863
    %v869 = vmul.f32 1.0, %v868
    %v870 = vmul.f32 %v792, %v854
    %v871 = vmul.f32 %v793, %v869
    %v872 = vmul.f32 %v794, %v854
    %v873 = vmul.f32 %v795, %v869
    %v874 = vmul.f32 %v796, %v854
    %v875 = vmul.f32 %v797, %v869
    %v876 = vmul.f32 %v798, %v854
    %v877 = vmul.f32 %v799, %v869
    %v878 = vmul.f32 %v870, 10.0
    %v879 = vmul.f32 %v871, 10.0
    %v880 = vmul.f32 %v872, 10.0
    %v881 = vmul.f32 %v873, 10.0
    %v882 = vmul.f32 %v874, 10.0
    %v883 = vmul.f32 %v875, 10.0
    %v884 = vmul.f32 %v876, 10.0
    %v885 = vmul.f32 %v877, 10.0
    %v886 = vadd.f32 %v80, %v878
    %v887 = vadd.f32 %v81, %v879
    %v888 = vadd.f32 %v82, %v880
    %v889 = vadd.f32 %v83, %v881
    %v890 = vadd.f32 %v84, %v882
    %v891 = vadd.f32 %v85, %v883
    %v892 = vadd.f32 %v86, %v884
    %v893 = vadd.f32 %v87, %v885
    %v894 = vpack.c.bf16 %v886, %v886
    %v895 = vpack.c.bf16 %v887, %v887
    %v896 = vpack.c.bf16 %v888, %v888
    %v897 = vpack.c.bf16 %v889, %v889
    %v898 = vpack.c.bf16 %v890, %v890
    %v899 = vpack.c.bf16 %v891, %v891
    %v900 = vpack.c.bf16 %v892, %v892
    %v901 = vpack.c.bf16 %v893, %v893
    %902 = vmatpush.bf16.msra.mxu0 %v555
    %903 = vmatpush.bf16.msra.mxu0 %v554
    %904 = vmatpush.bf16.msra.mxu0 %v553
    %905 = vmatpush.bf16.msra.mxu0 %v552
    %906 = vmatpush.bf16.msra.mxu0 %v551
    %907 = vmatpush.bf16.msra.mxu0 %v550
    %908 = vmatpush.bf16.msra.mxu0 %v549
    %909 = vmatpush.bf16.msra.mxu0 %v548
    %910 = vmatmul.bf16.gmra.mxu0 %v894
    %v911 = vpop.f32.mrf.mxu0
    %v912 = vadd.f32 %v282, %v911
    %v913 = vpop.f32.mrf.mxu0
    %914 = vdwg.mxu0
    %915 = vmatpush.bf16.msra.mxu0 %v563
    %916 = vmatpush.bf16.msra.mxu0 %v562
    %917 = vmatpush.bf16.msra.mxu0 %v561
    %918 = vmatpush.bf16.msra.mxu0 %v560
    %919 = vmatpush.bf16.msra.mxu0 %v559
    %920 = vmatpush.bf16.msra.mxu0 %v558
    %921 = vmatpush.bf16.msra.mxu0 %v557
    %922 = vmatpush.bf16.msra.mxu0 %v556
    %923 = vmatmul.bf16.gmra.mxu0 %v895
    %v924 = vpop.f32.mrf.mxu0
    %v925 = vadd.f32 %v912, %v924
    %v926 = vpop.f32.mrf.mxu0
    %927 = vdwg.mxu0
    %928 = vmatpush.bf16.msra.mxu0 %v571
    %929 = vmatpush.bf16.msra.mxu0 %v570
    %930 = vmatpush.bf16.msra.mxu0 %v569
    %931 = vmatpush.bf16.msra.mxu0 %v568
    %932 = vmatpush.bf16.msra.mxu0 %v567
    %933 = vmatpush.bf16.msra.mxu0 %v566
    %934 = vmatpush.bf16.msra.mxu0 %v565
    %935 = vmatpush.bf16.msra.mxu0 %v564
    %936 = vmatmul.bf16.gmra.mxu0 %v896
    %v937 = vpop.f32.mrf.mxu0
    %v938 = vadd.f32 %v925, %v937
    %v939 = vpop.f32.mrf.mxu0
    %940 = vdwg.mxu0
    %941 = vmatpush.bf16.msra.mxu0 %v579
    %942 = vmatpush.bf16.msra.mxu0 %v578
    %943 = vmatpush.bf16.msra.mxu0 %v577
    %944 = vmatpush.bf16.msra.mxu0 %v576
    %945 = vmatpush.bf16.msra.mxu0 %v575
    %946 = vmatpush.bf16.msra.mxu0 %v574
    %947 = vmatpush.bf16.msra.mxu0 %v573
    %948 = vmatpush.bf16.msra.mxu0 %v572
    %949 = vmatmul.bf16.gmra.mxu0 %v897
    %v950 = vpop.f32.mrf.mxu0
    %v951 = vadd.f32 %v938, %v950
    %v952 = vpop.f32.mrf.mxu0
    %953 = vdwg.mxu0
    %954 = vmatpush.bf16.msra.mxu0 %v587
    %955 = vmatpush.bf16.msra.mxu0 %v586
    %956 = vmatpush.bf16.msra.mxu0 %v585
    %957 = vmatpush.bf16.msra.mxu0 %v584
    %958 = vmatpush.bf16.msra.mxu0 %v583
    %959 = vmatpush.bf16.msra.mxu0 %v582
    %960 = vmatpush.bf16.msra.mxu0 %v581
    %961 = vmatpush.bf16.msra.mxu0 %v580
    %962 = vmatmul.bf16.gmra.mxu0 %v898
    %v963 = vpop.f32.mrf.mxu0
    %v964 = vadd.f32 %v951, %v963
    %v965 = vpop.f32.mrf.mxu0
    %966 = vdwg.mxu0
    %967 = vmatpush.bf16.msra.mxu0 %v595
    %968 = vmatpush.bf16.msra.mxu0 %v594
    %969 = vmatpush.bf16.msra.mxu0 %v593
    %970 = vmatpush.bf16.msra.mxu0 %v592
    %971 = vmatpush.bf16.msra.mxu0 %v591
    %972 = vmatpush.bf16.msra.mxu0 %v590
    %973 = vmatpush.bf16.msra.mxu0 %v589
    %974 = vmatpush.bf16.msra.mxu0 %v588
    %975 = vmatmul.bf16.gmra.mxu0 %v899
    %v976 = vpop.f32.mrf.mxu0
    %v977 = vadd.f32 %v964, %v976
    %v978 = vpop.f32.mrf.mxu0
    %979 = vdwg.mxu0
    %980 = vmatpush.bf16.msra.mxu0 %v603
    %981 = vmatpush.bf16.msra.mxu0 %v602
    %982 = vmatpush.bf16.msra.mxu0 %v601
    %983 = vmatpush.bf16.msra.mxu0 %v600
    %984 = vmatpush.bf16.msra.mxu0 %v599
    %985 = vmatpush.bf16.msra.mxu0 %v598
    %986 = vmatpush.bf16.msra.mxu0 %v597
    %987 = vmatpush.bf16.msra.mxu0 %v596
    %988 = vmatmul.bf16.gmra.mxu0 %v900
    %v989 = vpop.f32.mrf.mxu0
    %v990 = vadd.f32 %v977, %v989
    %v991 = vpop.f32.mrf.mxu0
    %992 = vdwg.mxu0
    %993 = vmatpush.bf16.msra.mxu0 %v611
    %994 = vmatpush.bf16.msra.mxu0 %v610
    %995 = vmatpush.bf16.msra.mxu0 %v609
    %996 = vmatpush.bf16.msra.mxu0 %v608
    %997 = vmatpush.bf16.msra.mxu0 %v607
    %998 = vmatpush.bf16.msra.mxu0 %v606
    %999 = vmatpush.bf16.msra.mxu0 %v605
    %1000 = vmatpush.bf16.msra.mxu0 %v604
    %1001 = vmatmul.bf16.gmra.mxu0 %v901
    %v1002 = vpop.f32.mrf.mxu0
    %v1003 = vadd.f32 %v990, %v1002
    %v1004 = vpop.f32.mrf.mxu0
    %1005 = vdwg.mxu0
    %1006 = vmax.xlane.f32.xlu0 %v1003
    %v1007 = vpop.xlane.xlu0 %1006
    %v1008 = vsub.f32 %v1003, %v1007
    %v1009 = vmul.f32 %v1008, 1.442695
    %v1010 = vpow.pop %v1009
    %1011 = vadd.xlane.f32.xlu0 %v1010
    %v1012 = vpop.xlane.xlu0 %1011
    %v1013 = vlog2.pop %v1012
    %v1014 = vmul.f32 %v1013, 0.6931472
    %v1015 = vsub.f32 %v1008, %v1014
    %v1016 = vmul.f32 %v1015, 1.442695
    %v1017 = vpow.pop %v1016
    %v1018 = vsub.f32 %v1017, %v791
    %v1019 = vpack.c.bf16 %v1018, %v1018
    %v1084 = vunpack.c.l.b16 %v216
    %v1085 = vunpack.c.h.b16 %v216
    %v1086 = vunpack.c.l.b16 %v217
    %v1087 = vunpack.c.h.b16 %v217
    %v1088 = vunpack.c.l.b16 %v218
    %v1089 = vunpack.c.h.b16 %v218
    %v1090 = vunpack.c.l.b16 %v219
    %v1091 = vunpack.c.h.b16 %v219
    %v1092 = vunpack.c.l.b16 %v220
    %v1093 = vunpack.c.h.b16 %v220
    %v1094 = vunpack.c.l.b16 %v221
    %v1095 = vunpack.c.h.b16 %v221
    %v1096 = vunpack.c.l.b16 %v222
    %v1097 = vunpack.c.h.b16 %v222
    %v1098 = vunpack.c.l.b16 %v223
    %v1099 = vunpack.c.h.b16 %v223
    %v1100 = vunpack.c.l.b16 %v224
    %v1101 = vunpack.c.h.b16 %v224
    %v1102 = vunpack.c.l.b16 %v225
    %v1103 = vunpack.c.h.b16 %v225
    %v1104 = vunpack.c.l.b16 %v226
    %v1105 = vunpack.c.h.b16 %v226
    %v1106 = vunpack.c.l.b16 %v227
    %v1107 = vunpack.c.h.b16 %v227
    %v1108 = vunpack.c.l.b16 %v228
    %v1109 = vunpack.c.h.b16 %v228
    %v1110 = vunpack.c.l.b16 %v229
    %v1111 = vunpack.c.h.b16 %v229
    %v1112 = vunpack.c.l.b16 %v230
    %v1113 = vunpack.c.h.b16 %v230
    %v1114 = vunpack.c.l.b16 %v231
    %v1115 = vunpack.c.h.b16 %v231
    %v1116 = vunpack.c.l.b16 %v232
    %v1117 = vunpack.c.h.b16 %v232
    %v1118 = vunpack.c.l.b16 %v233
    %v1119 = vunpack.c.h.b16 %v233
    %v1120 = vunpack.c.l.b16 %v234
    %v1121 = vunpack.c.h.b16 %v234
    %v1122 = vunpack.c.l.b16 %v235
    %v1123 = vunpack.c.h.b16 %v235
    %v1124 = vunpack.c.l.b16 %v236
    %v1125 = vunpack.c.h.b16 %v236
    %v1126 = vunpack.c.l.b16 %v237
    %v1127 = vunpack.c.h.b16 %v237
    %v1128 = vunpack.c.l.b16 %v238
    %v1129 = vunpack.c.h.b16 %v238
    %v1130 = vunpack.c.l.b16 %v239
    %v1131 = vunpack.c.h.b16 %v239
    %v1132 = vunpack.c.l.b16 %v240
    %v1133 = vunpack.c.h.b16 %v240
    %v1134 = vunpack.c.l.b16 %v241
    %v1135 = vunpack.c.h.b16 %v241
    %v1136 = vunpack.c.l.b16 %v242
    %v1137 = vunpack.c.h.b16 %v242
    %v1138 = vunpack.c.l.b16 %v243
    %v1139 = vunpack.c.h.b16 %v243
    %v1140 = vunpack.c.l.b16 %v244
    %v1141 = vunpack.c.h.b16 %v244
    %v1142 = vunpack.c.l.b16 %v245
    %v1143 = vunpack.c.h.b16 %v245
    %v1144 = vunpack.c.l.b16 %v246
    %v1145 = vunpack.c.h.b16 %v246
    %v1146 = vunpack.c.l.b16 %v247
    %v1147 = vunpack.c.h.b16 %v247
    %v1148 = vunpack.c.l.b16 %v248
    %v1149 = vunpack.c.h.b16 %v248
    %v1150 = vunpack.c.l.b16 %v249
    %v1151 = vunpack.c.h.b16 %v249
    %v1152 = vunpack.c.l.b16 %v250
    %v1153 = vunpack.c.h.b16 %v250
    %v1154 = vunpack.c.l.b16 %v251
    %v1155 = vunpack.c.h.b16 %v251
    %v1156 = vunpack.c.l.b16 %v252
    %v1157 = vunpack.c.h.b16 %v252
    %v1158 = vunpack.c.l.b16 %v253
    %v1159 = vunpack.c.h.b16 %v253
    %v1160 = vunpack.c.l.b16 %v254
    %v1161 = vunpack.c.h.b16 %v254
    %v1162 = vunpack.c.l.b16 %v255
    %v1163 = vunpack.c.h.b16 %v255
    %v1164 = vunpack.c.l.b16 %v256
    %v1165 = vunpack.c.h.b16 %v256
    %v1166 = vunpack.c.l.b16 %v257
    %v1167 = vunpack.c.h.b16 %v257
    %v1168 = vunpack.c.l.b16 %v258
    %v1169 = vunpack.c.h.b16 %v258
    %v1170 = vunpack.c.l.b16 %v259
    %v1171 = vunpack.c.h.b16 %v259
    %v1172 = vunpack.c.l.b16 %v260
    %v1173 = vunpack.c.h.b16 %v260
    %v1174 = vunpack.c.l.b16 %v261
    %v1175 = vunpack.c.h.b16 %v261
    %v1176 = vunpack.c.l.b16 %v262
    %v1177 = vunpack.c.h.b16 %v262
    %v1178 = vunpack.c.l.b16 %v263
    %v1179 = vunpack.c.h.b16 %v263
    %v1180 = vunpack.c.l.b16 %v264
    %v1181 = vunpack.c.h.b16 %v264
    %v1182 = vunpack.c.l.b16 %v265
    %v1183 = vunpack.c.h.b16 %v265
    %v1184 = vunpack.c.l.b16 %v266
    %v1185 = vunpack.c.h.b16 %v266
    %v1186 = vunpack.c.l.b16 %v267
    %v1187 = vunpack.c.h.b16 %v267
    %v1188 = vunpack.c.l.b16 %v268
    %v1189 = vunpack.c.h.b16 %v268
    %v1190 = vunpack.c.l.b16 %v269
    %v1191 = vunpack.c.h.b16 %v269
    %v1192 = vunpack.c.l.b16 %v270
    %v1193 = vunpack.c.h.b16 %v270
    %v1194 = vunpack.c.l.b16 %v271
    %v1195 = vunpack.c.h.b16 %v271
    %v1196 = vunpack.c.l.b16 %v272
    %v1197 = vunpack.c.h.b16 %v272
    %v1198 = vunpack.c.l.b16 %v273
    %v1199 = vunpack.c.h.b16 %v273
    %v1200 = vunpack.c.l.b16 %v274
    %v1201 = vunpack.c.h.b16 %v274
    %v1202 = vunpack.c.l.b16 %v275
    %v1203 = vunpack.c.h.b16 %v275
    %v1204 = vunpack.c.l.b16 %v276
    %v1205 = vunpack.c.h.b16 %v276
    %v1206 = vunpack.c.l.b16 %v277
    %v1207 = vunpack.c.h.b16 %v277
    %v1208 = vunpack.c.l.b16 %v278
    %v1209 = vunpack.c.h.b16 %v278
    %v1210 = vunpack.c.l.b16 %v279
    %v1211 = vunpack.c.h.b16 %v279
    %v1212 = vpack.c.b16 %v1092, %v1084
    %v1213 = vpack.c.b16 %v1093, %v1085
    %v1214 = vpack.c.b16 %v1094, %v1086
    %v1215 = vpack.c.b16 %v1095, %v1087
    %v1216 = vpack.c.b16 %v1096, %v1088
    %v1217 = vpack.c.b16 %v1097, %v1089
    %v1218 = vpack.c.b16 %v1098, %v1090
    %v1219 = vpack.c.b16 %v1099, %v1091
    %v1220 = vpack.c.b16 %v1108, %v1100
    %v1221 = vpack.c.b16 %v1109, %v1101
    %v1222 = vpack.c.b16 %v1110, %v1102
    %v1223 = vpack.c.b16 %v1111, %v1103
    %v1224 = vpack.c.b16 %v1112, %v1104
    %v1225 = vpack.c.b16 %v1113, %v1105
    %v1226 = vpack.c.b16 %v1114, %v1106
    %v1227 = vpack.c.b16 %v1115, %v1107
    %v1228 = vpack.c.b16 %v1124, %v1116
    %v1229 = vpack.c.b16 %v1125, %v1117
    %v1230 = vpack.c.b16 %v1126, %v1118
    %v1231 = vpack.c.b16 %v1127, %v1119
    %v1232 = vpack.c.b16 %v1128, %v1120
    %v1233 = vpack.c.b16 %v1129, %v1121
    %v1234 = vpack.c.b16 %v1130, %v1122
    %v1235 = vpack.c.b16 %v1131, %v1123
    %v1236 = vpack.c.b16 %v1140, %v1132
    %v1237 = vpack.c.b16 %v1141, %v1133
    %v1238 = vpack.c.b16 %v1142, %v1134
    %v1239 = vpack.c.b16 %v1143, %v1135
    %v1240 = vpack.c.b16 %v1144, %v1136
    %v1241 = vpack.c.b16 %v1145, %v1137
    %v1242 = vpack.c.b16 %v1146, %v1138
    %v1243 = vpack.c.b16 %v1147, %v1139
    %v1244 = vpack.c.b16 %v1156, %v1148
    %v1245 = vpack.c.b16 %v1157, %v1149
    %v1246 = vpack.c.b16 %v1158, %v1150
    %v1247 = vpack.c.b16 %v1159, %v1151
    %v1248 = vpack.c.b16 %v1160, %v1152
    %v1249 = vpack.c.b16 %v1161, %v1153
    %v1250 = vpack.c.b16 %v1162, %v1154
    %v1251 = vpack.c.b16 %v1163, %v1155
    %v1252 = vpack.c.b16 %v1172, %v1164
    %v1253 = vpack.c.b16 %v1173, %v1165
    %v1254 = vpack.c.b16 %v1174, %v1166
    %v1255 = vpack.c.b16 %v1175, %v1167
    %v1256 = vpack.c.b16 %v1176, %v1168
    %v1257 = vpack.c.b16 %v1177, %v1169
    %v1258 = vpack.c.b16 %v1178, %v1170
    %v1259 = vpack.c.b16 %v1179, %v1171
    %v1260 = vpack.c.b16 %v1188, %v1180
    %v1261 = vpack.c.b16 %v1189, %v1181
    %v1262 = vpack.c.b16 %v1190, %v1182
    %v1263 = vpack.c.b16 %v1191, %v1183
    %v1264 = vpack.c.b16 %v1192, %v1184
    %v1265 = vpack.c.b16 %v1193, %v1185
    %v1266 = vpack.c.b16 %v1194, %v1186
    %v1267 = vpack.c.b16 %v1195, %v1187
    %v1268 = vpack.c.b16 %v1204, %v1196
    %v1269 = vpack.c.b16 %v1205, %v1197
    %v1270 = vpack.c.b16 %v1206, %v1198
    %v1271 = vpack.c.b16 %v1207, %v1199
    %v1272 = vpack.c.b16 %v1208, %v1200
    %v1273 = vpack.c.b16 %v1209, %v1201
    %v1274 = vpack.c.b16 %v1210, %v1202
    %v1275 = vpack.c.b16 %v1211, %v1203
    %1340 = vmatpush.bf16.msra.mxu0 %v1268
    %1341 = vmatpush.bf16.msra.mxu0 %v1260
    %1342 = vmatpush.bf16.msra.mxu0 %v1252
    %1343 = vmatpush.bf16.msra.mxu0 %v1244
    %1344 = vmatpush.bf16.msra.mxu0 %v1236
    %1345 = vmatpush.bf16.msra.mxu0 %v1228
    %1346 = vmatpush.bf16.msra.mxu0 %v1220
    %1347 = vmatpush.bf16.msra.mxu0 %v1212
    %1348 = vmatmul.bf16.gmra.mxu0 %v1019
    %v1349 = vpop.f32.mrf.mxu0
    %v1350 = vadd.f32 0.0, %v1349
    %v1351 = vpop.f32.mrf.mxu0
    %1352 = vdwg.mxu0
    %1353 = vmatpush.bf16.msra.mxu0 %v1269
    %1354 = vmatpush.bf16.msra.mxu0 %v1261
    %1355 = vmatpush.bf16.msra.mxu0 %v1253
    %1356 = vmatpush.bf16.msra.mxu0 %v1245
    %1357 = vmatpush.bf16.msra.mxu0 %v1237
    %1358 = vmatpush.bf16.msra.mxu0 %v1229
    %1359 = vmatpush.bf16.msra.mxu0 %v1221
    %1360 = vmatpush.bf16.msra.mxu0 %v1213
    %1361 = vmatmul.bf16.gmra.mxu0 %v1019
    %v1362 = vpop.f32.mrf.mxu0
    %v1363 = vadd.f32 0.0, %v1362
    %v1364 = vpop.f32.mrf.mxu0
    %1365 = vdwg.mxu0
    %1366 = vmatpush.bf16.msra.mxu0 %v1270
    %1367 = vmatpush.bf16.msra.mxu0 %v1262
    %1368 = vmatpush.bf16.msra.mxu0 %v1254
    %1369 = vmatpush.bf16.msra.mxu0 %v1246
    %1370 = vmatpush.bf16.msra.mxu0 %v1238
    %1371 = vmatpush.bf16.msra.mxu0 %v1230
    %1372 = vmatpush.bf16.msra.mxu0 %v1222
    %1373 = vmatpush.bf16.msra.mxu0 %v1214
    %1374 = vmatmul.bf16.gmra.mxu0 %v1019
    %v1375 = vpop.f32.mrf.mxu0
    %v1376 = vadd.f32 0.0, %v1375
    %v1377 = vpop.f32.mrf.mxu0
    %1378 = vdwg.mxu0
    %1379 = vmatpush.bf16.msra.mxu0 %v1271
    %1380 = vmatpush.bf16.msra.mxu0 %v1263
    %1381 = vmatpush.bf16.msra.mxu0 %v1255
    %1382 = vmatpush.bf16.msra.mxu0 %v1247
    %1383 = vmatpush.bf16.msra.mxu0 %v1239
    %1384 = vmatpush.bf16.msra.mxu0 %v1231
    %1385 = vmatpush.bf16.msra.mxu0 %v1223
    %1386 = vmatpush.bf16.msra.mxu0 %v1215
    %1387 = vmatmul.bf16.gmra.mxu0 %v1019
    %v1388 = vpop.f32.mrf.mxu0
    %v1389 = vadd.f32 0.0, %v1388
    %v1390 = vpop.f32.mrf.mxu0
    %1391 = vdwg.mxu0
    %1392 = vmatpush.bf16.msra.mxu0 %v1272
    %1393 = vmatpush.bf16.msra.mxu0 %v1264
    %1394 = vmatpush.bf16.msra.mxu0 %v1256
    %1395 = vmatpush.bf16.msra.mxu0 %v1248
    %1396 = vmatpush.bf16.msra.mxu0 %v1240
    %1397 = vmatpush.bf16.msra.mxu0 %v1232
    %1398 = vmatpush.bf16.msra.mxu0 %v1224
    %1399 = vmatpush.bf16.msra.mxu0 %v1216
    %1400 = vmatmul.bf16.gmra.mxu0 %v1019
    %v1401 = vpop.f32.mrf.mxu0
    %v1402 = vadd.f32 0.0, %v1401
    %v1403 = vpop.f32.mrf.mxu0
    %1404 = vdwg.mxu0
    %1405 = vmatpush.bf16.msra.mxu0 %v1273
    %1406 = vmatpush.bf16.msra.mxu0 %v1265
    %1407 = vmatpush.bf16.msra.mxu0 %v1257
    %1408 = vmatpush.bf16.msra.mxu0 %v1249
    %1409 = vmatpush.bf16.msra.mxu0 %v1241
    %1410 = vmatpush.bf16.msra.mxu0 %v1233
    %1411 = vmatpush.bf16.msra.mxu0 %v1225
    %1412 = vmatpush.bf16.msra.mxu0 %v1217
    %1413 = vmatmul.bf16.gmra.mxu0 %v1019
    %v1414 = vpop.f32.mrf.mxu0
    %v1415 = vadd.f32 0.0, %v1414
    %v1416 = vpop.f32.mrf.mxu0
    %1417 = vdwg.mxu0
    %1418 = vmatpush.bf16.msra.mxu0 %v1274
    %1419 = vmatpush.bf16.msra.mxu0 %v1266
    %1420 = vmatpush.bf16.msra.mxu0 %v1258
    %1421 = vmatpush.bf16.msra.mxu0 %v1250
    %1422 = vmatpush.bf16.msra.mxu0 %v1242
    %1423 = vmatpush.bf16.msra.mxu0 %v1234
    %1424 = vmatpush.bf16.msra.mxu0 %v1226
    %1425 = vmatpush.bf16.msra.mxu0 %v1218
    %1426 = vmatmul.bf16.gmra.mxu0 %v1019
    %v1427 = vpop.f32.mrf.mxu0
    %v1428 = vadd.f32 0.0, %v1427
    %v1429 = vpop.f32.mrf.mxu0
    %1430 = vdwg.mxu0
    %1431 = vmatpush.bf16.msra.mxu0 %v1275
    %1432 = vmatpush.bf16.msra.mxu0 %v1267
    %1433 = vmatpush.bf16.msra.mxu0 %v1259
    %1434 = vmatpush.bf16.msra.mxu0 %v1251
    %1435 = vmatpush.bf16.msra.mxu0 %v1243
    %1436 = vmatpush.bf16.msra.mxu0 %v1235
    %1437 = vmatpush.bf16.msra.mxu0 %v1227
    %1438 = vmatpush.bf16.msra.mxu0 %v1219
    %1439 = vmatmul.bf16.gmra.mxu0 %v1019
    %v1440 = vpop.f32.mrf.mxu0
    %v1441 = vadd.f32 0.0, %v1440
    %v1442 = vpop.f32.mrf.mxu0
    %1443 = vdwg.mxu0
    %v1444 = vmul.f32 %v1350, %v1350
    %v1445 = vmul.f32 %v1363, %v1363
    %v1446 = vmul.f32 %v1376, %v1376
    %v1447 = vmul.f32 %v1389, %v1389
    %v1448 = vadd.f32 %v1444, %v1446
    %v1449 = vadd.f32 %v1445, %v1447
    %v1450 = vmul.f32 %v1402, %v1402
    %v1451 = vmul.f32 %v1415, %v1415
    %v1452 = vadd.f32 %v1448, %v1450
    %v1453 = vadd.f32 %v1449, %v1451
    %v1454 = vmul.f32 %v1428, %v1428
    %v1455 = vmul.f32 %v1441, %v1441
    %v1456 = vadd.f32 %v1452, %v1454
    %v1457 = vadd.f32 %v1453, %v1455
    %v1458 = vrsqrt.pop %v1456
    %v1459 = vmul.f32 %v1458, %v1456
    %v1460 = vmul.f32 %v1459, %v1458
    %v1461 = vmul.f32 0.5, %v1460
    %v1462 = vsub.f32 1.5, %v1461
    %v1463 = vmul.f32 %v1458, %v1462
    %v1464 = vmul.f32 %v1456, %v1463
    %vm1465 = vcmp.eq.f32.partialorder %v1456, inf
    %v1466 = vsel %vm1465, %v1456, %v1464
    %vm1467 = vcmp.eq.f32.partialorder %v1456, 0.0
    %v1468 = vand.u32 %v1456, 2147483648
    %v1469 = vsel %vm1467, %v1468, %v1466
    %v1470 = vrsqrt.pop %v1457
    %v1471 = vmul.f32 %v1470, %v1457
    %v1472 = vmul.f32 %v1471, %v1470
    %v1473 = vmul.f32 0.5, %v1472
    %v1474 = vsub.f32 1.5, %v1473
    %v1475 = vmul.f32 %v1470, %v1474
    %v1476 = vmul.f32 %v1457, %v1475
    %vm1477 = vcmp.eq.f32.partialorder %v1457, inf
    %v1478 = vsel %vm1477, %v1457, %v1476
    %vm1479 = vcmp.eq.f32.partialorder %v1457, 0.0
    %v1480 = vand.u32 %v1457, 2147483648
    %v1481 = vsel %vm1479, %v1480, %v1478
    %v1482 = vadd.f32 %v1469, 1e-08
    %v1483 = vadd.f32 %v1481, 1e-08
    %v1484 = vrcp.pop %v1482
    %v1485 = vmul.f32 %v1482, %v1484
    %v1486 = vsub.f32 1.0, %v1485
    %v1487 = vmul.f32 %v1484, %v1486
    %v1488 = vadd.f32 %v1484, %v1487
    %vm1489 = vweird.f32 %v1482
    %vm1490 = vweird.f32 %v1484
    %vm1491 = vmor %vm1489, %vm1490
    %v1492 = vsel %vm1491, %v1484, %v1488
    %v1493 = vand.u32 2147483647, %v1482
    %vm1494 = vcmp.eq.f32.partialorder %v1493, 8.507059e+37
    %v1495 = vand.u32 %v1482, 2147483648
    %v1496 = vor.u32 1.1754944e-38, %v1495
    %v1497 = vsel %vm1494, %v1496, %v1492
    %v1498 = vmul.f32 1.0, %v1497
    %v1499 = vrcp.pop %v1483
    %v1500 = vmul.f32 %v1483, %v1499
    %v1501 = vsub.f32 1.0, %v1500
    %v1502 = vmul.f32 %v1499, %v1501
    %v1503 = vadd.f32 %v1499, %v1502
    %vm1504 = vweird.f32 %v1483
    %vm1505 = vweird.f32 %v1499
    %vm1506 = vmor %vm1504, %vm1505
    %v1507 = vsel %vm1506, %v1499, %v1503
    %v1508 = vand.u32 2147483647, %v1483
    %vm1509 = vcmp.eq.f32.partialorder %v1508, 8.507059e+37
    %v1510 = vand.u32 %v1483, 2147483648
    %v1511 = vor.u32 1.1754944e-38, %v1510
    %v1512 = vsel %vm1509, %v1511, %v1507
    %v1513 = vmul.f32 1.0, %v1512
    %v1514 = vmul.f32 %v1350, %v1498
    %v1515 = vmul.f32 %v1363, %v1513
    %v1516 = vmul.f32 %v1376, %v1498
    %v1517 = vmul.f32 %v1389, %v1513
    %v1518 = vmul.f32 %v1402, %v1498
    %v1519 = vmul.f32 %v1415, %v1513
    %v1520 = vmul.f32 %v1428, %v1498
    %v1521 = vmul.f32 %v1441, %v1513
    %v1522 = vmul.f32 %v1514, 10.0
    %v1523 = vmul.f32 %v1515, 10.0
    %v1524 = vmul.f32 %v1516, 10.0
    %v1525 = vmul.f32 %v1517, 10.0
    %v1526 = vmul.f32 %v1518, 10.0
    %v1527 = vmul.f32 %v1519, 10.0
    %v1528 = vmul.f32 %v1520, 10.0
    %v1529 = vmul.f32 %v1521, 10.0
    %v1530 = vadd.f32 %v80, %v1522
    %v1531 = vadd.f32 %v81, %v1523
    %v1532 = vadd.f32 %v82, %v1524
    %v1533 = vadd.f32 %v83, %v1525
    %v1534 = vadd.f32 %v84, %v1526
    %v1535 = vadd.f32 %v85, %v1527
    %v1536 = vadd.f32 %v86, %v1528
    %v1537 = vadd.f32 %v87, %v1529
    %v1538 = vpack.c.bf16 %v1530, %v1530
    %v1539 = vpack.c.bf16 %v1531, %v1531
    %v1540 = vpack.c.bf16 %v1532, %v1532
    %v1541 = vpack.c.bf16 %v1533, %v1533
    %v1542 = vpack.c.bf16 %v1534, %v1534
    %v1543 = vpack.c.bf16 %v1535, %v1535
    %v1544 = vpack.c.bf16 %v1536, %v1536
    %v1545 = vpack.c.bf16 %v1537, %v1537
    %1546 = vmatpush.bf16.msra.mxu0 %v555
    %1547 = vmatpush.bf16.msra.mxu0 %v554
    %1548 = vmatpush.bf16.msra.mxu0 %v553
    %1549 = vmatpush.bf16.msra.mxu0 %v552
    %1550 = vmatpush.bf16.msra.mxu0 %v551
    %1551 = vmatpush.bf16.msra.mxu0 %v550
    %1552 = vmatpush.bf16.msra.mxu0 %v549
    %1553 = vmatpush.bf16.msra.mxu0 %v548
    %1554 = vmatmul.bf16.gmra.mxu0 %v1538
    %v1555 = vpop.f32.mrf.mxu0
    %v1556 = vadd.f32 %v282, %v1555
    %v1557 = vpop.f32.mrf.mxu0
    %1558 = vdwg.mxu0
    %1559 = vmatpush.bf16.msra.mxu0 %v563
    %1560 = vmatpush.bf16.msra.mxu0 %v562
    %1561 = vmatpush.bf16.msra.mxu0 %v561
    %1562 = vmatpush.bf16.msra.mxu0 %v560
    %1563 = vmatpush.bf16.msra.mxu0 %v559
    %1564 = vmatpush.bf16.msra.mxu0 %v558
    %1565 = vmatpush.bf16.msra.mxu0 %v557
    %1566 = vmatpush.bf16.msra.mxu0 %v556
    %1567 = vmatmul.bf16.gmra.mxu0 %v1539
    %v1568 = vpop.f32.mrf.mxu0
    %v1569 = vadd.f32 %v1556, %v1568
    %v1570 = vpop.f32.mrf.mxu0
    %1571 = vdwg.mxu0
    %1572 = vmatpush.bf16.msra.mxu0 %v571
    %1573 = vmatpush.bf16.msra.mxu0 %v570
    %1574 = vmatpush.bf16.msra.mxu0 %v569
    %1575 = vmatpush.bf16.msra.mxu0 %v568
    %1576 = vmatpush.bf16.msra.mxu0 %v567
    %1577 = vmatpush.bf16.msra.mxu0 %v566
    %1578 = vmatpush.bf16.msra.mxu0 %v565
    %1579 = vmatpush.bf16.msra.mxu0 %v564
    %1580 = vmatmul.bf16.gmra.mxu0 %v1540
    %v1581 = vpop.f32.mrf.mxu0
    %v1582 = vadd.f32 %v1569, %v1581
    %v1583 = vpop.f32.mrf.mxu0
    %1584 = vdwg.mxu0
    %1585 = vmatpush.bf16.msra.mxu0 %v579
    %1586 = vmatpush.bf16.msra.mxu0 %v578
    %1587 = vmatpush.bf16.msra.mxu0 %v577
    %1588 = vmatpush.bf16.msra.mxu0 %v576
    %1589 = vmatpush.bf16.msra.mxu0 %v575
    %1590 = vmatpush.bf16.msra.mxu0 %v574
    %1591 = vmatpush.bf16.msra.mxu0 %v573
    %1592 = vmatpush.bf16.msra.mxu0 %v572
    %1593 = vmatmul.bf16.gmra.mxu0 %v1541
    %v1594 = vpop.f32.mrf.mxu0
    %v1595 = vadd.f32 %v1582, %v1594
    %v1596 = vpop.f32.mrf.mxu0
    %1597 = vdwg.mxu0
    %1598 = vmatpush.bf16.msra.mxu0 %v587
    %1599 = vmatpush.bf16.msra.mxu0 %v586
    %1600 = vmatpush.bf16.msra.mxu0 %v585
    %1601 = vmatpush.bf16.msra.mxu0 %v584
    %1602 = vmatpush.bf16.msra.mxu0 %v583
    %1603 = vmatpush.bf16.msra.mxu0 %v582
    %1604 = vmatpush.bf16.msra.mxu0 %v581
    %1605 = vmatpush.bf16.msra.mxu0 %v580
    %1606 = vmatmul.bf16.gmra.mxu0 %v1542
    %v1607 = vpop.f32.mrf.mxu0
    %v1608 = vadd.f32 %v1595, %v1607
    %v1609 = vpop.f32.mrf.mxu0
    %1610 = vdwg.mxu0
    %1611 = vmatpush.bf16.msra.mxu0 %v595
    %1612 = vmatpush.bf16.msra.mxu0 %v594
    %1613 = vmatpush.bf16.msra.mxu0 %v593
    %1614 = vmatpush.bf16.msra.mxu0 %v592
    %1615 = vmatpush.bf16.msra.mxu0 %v591
    %1616 = vmatpush.bf16.msra.mxu0 %v590
    %1617 = vmatpush.bf16.msra.mxu0 %v589
    %1618 = vmatpush.bf16.msra.mxu0 %v588
    %1619 = vmatmul.bf16.gmra.mxu0 %v1543
    %v1620 = vpop.f32.mrf.mxu0
    %v1621 = vadd.f32 %v1608, %v1620
    %v1622 = vpop.f32.mrf.mxu0
    %1623 = vdwg.mxu0
    %1624 = vmatpush.bf16.msra.mxu0 %v603
    %1625 = vmatpush.bf16.msra.mxu0 %v602
    %1626 = vmatpush.bf16.msra.mxu0 %v601
    %1627 = vmatpush.bf16.msra.mxu0 %v600
    %1628 = vmatpush.bf16.msra.mxu0 %v599
    %1629 = vmatpush.bf16.msra.mxu0 %v598
    %1630 = vmatpush.bf16.msra.mxu0 %v597
    %1631 = vmatpush.bf16.msra.mxu0 %v596
    %1632 = vmatmul.bf16.gmra.mxu0 %v1544
    %v1633 = vpop.f32.mrf.mxu0
    %v1634 = vadd.f32 %v1621, %v1633
    %v1635 = vpop.f32.mrf.mxu0
    %1636 = vdwg.mxu0
    %1637 = vmatpush.bf16.msra.mxu0 %v611
    %1638 = vmatpush.bf16.msra.mxu0 %v610
    %1639 = vmatpush.bf16.msra.mxu0 %v609
    %1640 = vmatpush.bf16.msra.mxu0 %v608
    %1641 = vmatpush.bf16.msra.mxu0 %v607
    %1642 = vmatpush.bf16.msra.mxu0 %v606
    %1643 = vmatpush.bf16.msra.mxu0 %v605
    %1644 = vmatpush.bf16.msra.mxu0 %v604
    %1645 = vmatmul.bf16.gmra.mxu0 %v1545
    %v1646 = vpop.f32.mrf.mxu0
    %v1647 = vadd.f32 %v1634, %v1646
    %v1648 = vpop.f32.mrf.mxu0
    %1649 = vdwg.mxu0
    %1650 = vmax.xlane.f32.xlu0 %v1647
    %v1651 = vpop.xlane.xlu0 %1650
    %v1652 = vsub.f32 %v1647, %v1651
    %v1653 = vmul.f32 %v1652, 1.442695
    %v1654 = vpow.pop %v1653
    %1655 = vadd.xlane.f32.xlu0 %v1654
    %v1656 = vpop.xlane.xlu0 %1655
    %v1657 = vlog2.pop %v1656
    %v1658 = vmul.f32 %v1657, 0.6931472
    %v1659 = vsub.f32 %v1652, %v1658
    %v1660 = vmul.f32 %v1659, 1.442695
    %v1661 = vpow.pop %v1660
    %v1662 = vsub.f32 %v1661, %v791
    %v1663 = vpack.c.bf16 %v1662, %v1662
    %1664 = vmatpush.bf16.msra.mxu0 %v1268
    %1665 = vmatpush.bf16.msra.mxu0 %v1260
    %1666 = vmatpush.bf16.msra.mxu0 %v1252
    %1667 = vmatpush.bf16.msra.mxu0 %v1244
    %1668 = vmatpush.bf16.msra.mxu0 %v1236
    %1669 = vmatpush.bf16.msra.mxu0 %v1228
    %1670 = vmatpush.bf16.msra.mxu0 %v1220
    %1671 = vmatpush.bf16.msra.mxu0 %v1212
    %1672 = vmatmul.bf16.gmra.mxu0 %v1663
    %v1673 = vpop.f32.mrf.mxu0
    %v1674 = vadd.f32 0.0, %v1673
    %v1675 = vpop.f32.mrf.mxu0
    %1676 = vdwg.mxu0
    %1677 = vmatpush.bf16.msra.mxu0 %v1269
    %1678 = vmatpush.bf16.msra.mxu0 %v1261
    %1679 = vmatpush.bf16.msra.mxu0 %v1253
    %1680 = vmatpush.bf16.msra.mxu0 %v1245
    %1681 = vmatpush.bf16.msra.mxu0 %v1237
    %1682 = vmatpush.bf16.msra.mxu0 %v1229
    %1683 = vmatpush.bf16.msra.mxu0 %v1221
    %1684 = vmatpush.bf16.msra.mxu0 %v1213
    %1685 = vmatmul.bf16.gmra.mxu0 %v1663
    %v1686 = vpop.f32.mrf.mxu0
    %v1687 = vadd.f32 0.0, %v1686
    %v1688 = vpop.f32.mrf.mxu0
    %1689 = vdwg.mxu0
    %1690 = vmatpush.bf16.msra.mxu0 %v1270
    %1691 = vmatpush.bf16.msra.mxu0 %v1262
    %1692 = vmatpush.bf16.msra.mxu0 %v1254
    %1693 = vmatpush.bf16.msra.mxu0 %v1246
    %1694 = vmatpush.bf16.msra.mxu0 %v1238
    %1695 = vmatpush.bf16.msra.mxu0 %v1230
    %1696 = vmatpush.bf16.msra.mxu0 %v1222
    %1697 = vmatpush.bf16.msra.mxu0 %v1214
    %1698 = vmatmul.bf16.gmra.mxu0 %v1663
    %v1699 = vpop.f32.mrf.mxu0
    %v1700 = vadd.f32 0.0, %v1699
    %v1701 = vpop.f32.mrf.mxu0
    %1702 = vdwg.mxu0
    %1703 = vmatpush.bf16.msra.mxu0 %v1271
    %1704 = vmatpush.bf16.msra.mxu0 %v1263
    %1705 = vmatpush.bf16.msra.mxu0 %v1255
    %1706 = vmatpush.bf16.msra.mxu0 %v1247
    %1707 = vmatpush.bf16.msra.mxu0 %v1239
    %1708 = vmatpush.bf16.msra.mxu0 %v1231
    %1709 = vmatpush.bf16.msra.mxu0 %v1223
    %1710 = vmatpush.bf16.msra.mxu0 %v1215
    %1711 = vmatmul.bf16.gmra.mxu0 %v1663
    %v1712 = vpop.f32.mrf.mxu0
    %v1713 = vadd.f32 0.0, %v1712
    %v1714 = vpop.f32.mrf.mxu0
    %1715 = vdwg.mxu0
    %1716 = vmatpush.bf16.msra.mxu0 %v1272
    %1717 = vmatpush.bf16.msra.mxu0 %v1264
    %1718 = vmatpush.bf16.msra.mxu0 %v1256
    %1719 = vmatpush.bf16.msra.mxu0 %v1248
    %1720 = vmatpush.bf16.msra.mxu0 %v1240
    %1721 = vmatpush.bf16.msra.mxu0 %v1232
    %1722 = vmatpush.bf16.msra.mxu0 %v1224
    %1723 = vmatpush.bf16.msra.mxu0 %v1216
    %1724 = vmatmul.bf16.gmra.mxu0 %v1663
    %v1725 = vpop.f32.mrf.mxu0
    %v1726 = vadd.f32 0.0, %v1725
    %v1727 = vpop.f32.mrf.mxu0
    %1728 = vdwg.mxu0
    %1729 = vmatpush.bf16.msra.mxu0 %v1273
    %1730 = vmatpush.bf16.msra.mxu0 %v1265
    %1731 = vmatpush.bf16.msra.mxu0 %v1257
    %1732 = vmatpush.bf16.msra.mxu0 %v1249
    %1733 = vmatpush.bf16.msra.mxu0 %v1241
    %1734 = vmatpush.bf16.msra.mxu0 %v1233
    %1735 = vmatpush.bf16.msra.mxu0 %v1225
    %1736 = vmatpush.bf16.msra.mxu0 %v1217
    %1737 = vmatmul.bf16.gmra.mxu0 %v1663
    %v1738 = vpop.f32.mrf.mxu0
    %v1739 = vadd.f32 0.0, %v1738
    %v1740 = vpop.f32.mrf.mxu0
    %1741 = vdwg.mxu0
    %1742 = vmatpush.bf16.msra.mxu0 %v1274
    %1743 = vmatpush.bf16.msra.mxu0 %v1266
    %1744 = vmatpush.bf16.msra.mxu0 %v1258
    %1745 = vmatpush.bf16.msra.mxu0 %v1250
    %1746 = vmatpush.bf16.msra.mxu0 %v1242
    %1747 = vmatpush.bf16.msra.mxu0 %v1234
    %1748 = vmatpush.bf16.msra.mxu0 %v1226
    %1749 = vmatpush.bf16.msra.mxu0 %v1218
    %1750 = vmatmul.bf16.gmra.mxu0 %v1663
    %v1751 = vpop.f32.mrf.mxu0
    %v1752 = vadd.f32 0.0, %v1751
    %v1753 = vpop.f32.mrf.mxu0
    %1754 = vdwg.mxu0
    %1755 = vmatpush.bf16.msra.mxu0 %v1275
    %1756 = vmatpush.bf16.msra.mxu0 %v1267
    %1757 = vmatpush.bf16.msra.mxu0 %v1259
    %1758 = vmatpush.bf16.msra.mxu0 %v1251
    %1759 = vmatpush.bf16.msra.mxu0 %v1243
    %1760 = vmatpush.bf16.msra.mxu0 %v1235
    %1761 = vmatpush.bf16.msra.mxu0 %v1227
    %1762 = vmatpush.bf16.msra.mxu0 %v1219
    %1763 = vmatmul.bf16.gmra.mxu0 %v1663
    %v1764 = vpop.f32.mrf.mxu0
    %v1765 = vadd.f32 0.0, %v1764
    %v1766 = vpop.f32.mrf.mxu0
    %1767 = vdwg.mxu0
    %v1768 = vmul.f32 %v1674, %v1674
    %v1769 = vmul.f32 %v1687, %v1687
    %v1770 = vmul.f32 %v1700, %v1700
    %v1771 = vmul.f32 %v1713, %v1713
    %v1772 = vadd.f32 %v1768, %v1770
    %v1773 = vadd.f32 %v1769, %v1771
    %v1774 = vmul.f32 %v1726, %v1726
    %v1775 = vmul.f32 %v1739, %v1739
    %v1776 = vadd.f32 %v1772, %v1774
    %v1777 = vadd.f32 %v1773, %v1775
    %v1778 = vmul.f32 %v1752, %v1752
    %v1779 = vmul.f32 %v1765, %v1765
    %v1780 = vadd.f32 %v1776, %v1778
    %v1781 = vadd.f32 %v1777, %v1779
    %v1782 = vrsqrt.pop %v1780
    %v1783 = vmul.f32 %v1782, %v1780
    %v1784 = vmul.f32 %v1783, %v1782
    %v1785 = vmul.f32 0.5, %v1784
    %v1786 = vsub.f32 1.5, %v1785
    %v1787 = vmul.f32 %v1782, %v1786
    %v1788 = vmul.f32 %v1780, %v1787
    %vm1789 = vcmp.eq.f32.partialorder %v1780, inf
    %v1790 = vsel %vm1789, %v1780, %v1788
    %vm1791 = vcmp.eq.f32.partialorder %v1780, 0.0
    %v1792 = vand.u32 %v1780, 2147483648
    %v1793 = vsel %vm1791, %v1792, %v1790
    %v1794 = vrsqrt.pop %v1781
    %v1795 = vmul.f32 %v1794, %v1781
    %v1796 = vmul.f32 %v1795, %v1794
    %v1797 = vmul.f32 0.5, %v1796
    %v1798 = vsub.f32 1.5, %v1797
    %v1799 = vmul.f32 %v1794, %v1798
    %v1800 = vmul.f32 %v1781, %v1799
    %vm1801 = vcmp.eq.f32.partialorder %v1781, inf
    %v1802 = vsel %vm1801, %v1781, %v1800
    %vm1803 = vcmp.eq.f32.partialorder %v1781, 0.0
    %v1804 = vand.u32 %v1781, 2147483648
    %v1805 = vsel %vm1803, %v1804, %v1802
    %v1806 = vadd.f32 %v1793, 1e-08
    %v1807 = vadd.f32 %v1805, 1e-08
    %v1808 = vrcp.pop %v1806
    %v1809 = vmul.f32 %v1806, %v1808
    %v1810 = vsub.f32 1.0, %v1809
    %v1811 = vmul.f32 %v1808, %v1810
    %v1812 = vadd.f32 %v1808, %v1811
    %vm1813 = vweird.f32 %v1806
    %vm1814 = vweird.f32 %v1808
    %vm1815 = vmor %vm1813, %vm1814
    %v1816 = vsel %vm1815, %v1808, %v1812
    %v1817 = vand.u32 2147483647, %v1806
    %vm1818 = vcmp.eq.f32.partialorder %v1817, 8.507059e+37
    %v1819 = vand.u32 %v1806, 2147483648
    %v1820 = vor.u32 1.1754944e-38, %v1819
    %v1821 = vsel %vm1818, %v1820, %v1816
    %v1822 = vmul.f32 1.0, %v1821
    %v1823 = vrcp.pop %v1807
    %v1824 = vmul.f32 %v1807, %v1823
    %v1825 = vsub.f32 1.0, %v1824
    %v1826 = vmul.f32 %v1823, %v1825
    %v1827 = vadd.f32 %v1823, %v1826
    %vm1828 = vweird.f32 %v1807
    %vm1829 = vweird.f32 %v1823
    %vm1830 = vmor %vm1828, %vm1829
    %v1831 = vsel %vm1830, %v1823, %v1827
    %v1832 = vand.u32 2147483647, %v1807
    %vm1833 = vcmp.eq.f32.partialorder %v1832, 8.507059e+37
    %v1834 = vand.u32 %v1807, 2147483648
    %v1835 = vor.u32 1.1754944e-38, %v1834
    %v1836 = vsel %vm1833, %v1835, %v1831
    %v1837 = vmul.f32 1.0, %v1836
    %v1838 = vmul.f32 %v1674, %v1822
    %v1839 = vmul.f32 %v1687, %v1837
    %v1840 = vmul.f32 %v1700, %v1822
    %v1841 = vmul.f32 %v1713, %v1837
    %v1842 = vmul.f32 %v1726, %v1822
    %v1843 = vmul.f32 %v1739, %v1837
    %v1844 = vmul.f32 %v1752, %v1822
    %v1845 = vmul.f32 %v1765, %v1837
    %v1846 = vadd.f32 %v80, %v1838
    %v1847 = vadd.f32 %v81, %v1839
    %v1848 = vadd.f32 %v82, %v1840
    %v1849 = vadd.f32 %v83, %v1841
    %v1850 = vadd.f32 %v84, %v1842
    %v1851 = vadd.f32 %v85, %v1843
    %v1852 = vadd.f32 %v86, %v1844
    %v1853 = vadd.f32 %v87, %v1845
    %v1854 = vpack.c.bf16 %v1846, %v1846
    %v1855 = vpack.c.bf16 %v1847, %v1847
    %v1856 = vpack.c.bf16 %v1848, %v1848
    %v1857 = vpack.c.bf16 %v1849, %v1849
    %v1858 = vpack.c.bf16 %v1850, %v1850
    %v1859 = vpack.c.bf16 %v1851, %v1851
    %v1860 = vpack.c.bf16 %v1852, %v1852
    %v1861 = vpack.c.bf16 %v1853, %v1853
    %1862 = vmatpush.bf16.msra.mxu0 %v555
    %1863 = vmatpush.bf16.msra.mxu0 %v554
    %1864 = vmatpush.bf16.msra.mxu0 %v553
    %1865 = vmatpush.bf16.msra.mxu0 %v552
    %1866 = vmatpush.bf16.msra.mxu0 %v551
    %1867 = vmatpush.bf16.msra.mxu0 %v550
    %1868 = vmatpush.bf16.msra.mxu0 %v549
    %1869 = vmatpush.bf16.msra.mxu0 %v548
    %1870 = vmatmul.bf16.gmra.mxu0 %v1854
    %v1871 = vpop.f32.mrf.mxu0
    %v1872 = vadd.f32 %v282, %v1871
    %v1873 = vpop.f32.mrf.mxu0
    %1874 = vdwg.mxu0
    %1875 = vmatpush.bf16.msra.mxu0 %v563
    %1876 = vmatpush.bf16.msra.mxu0 %v562
    %1877 = vmatpush.bf16.msra.mxu0 %v561
    %1878 = vmatpush.bf16.msra.mxu0 %v560
    %1879 = vmatpush.bf16.msra.mxu0 %v559
    %1880 = vmatpush.bf16.msra.mxu0 %v558
    %1881 = vmatpush.bf16.msra.mxu0 %v557
    %1882 = vmatpush.bf16.msra.mxu0 %v556
    %1883 = vmatmul.bf16.gmra.mxu0 %v1855
    %v1884 = vpop.f32.mrf.mxu0
    %v1885 = vadd.f32 %v1872, %v1884
    %v1886 = vpop.f32.mrf.mxu0
    %1887 = vdwg.mxu0
    %1888 = vmatpush.bf16.msra.mxu0 %v571
    %1889 = vmatpush.bf16.msra.mxu0 %v570
    %1890 = vmatpush.bf16.msra.mxu0 %v569
    %1891 = vmatpush.bf16.msra.mxu0 %v568
    %1892 = vmatpush.bf16.msra.mxu0 %v567
    %1893 = vmatpush.bf16.msra.mxu0 %v566
    %1894 = vmatpush.bf16.msra.mxu0 %v565
    %1895 = vmatpush.bf16.msra.mxu0 %v564
    %1896 = vmatmul.bf16.gmra.mxu0 %v1856
    %v1897 = vpop.f32.mrf.mxu0
    %v1898 = vadd.f32 %v1885, %v1897
    %v1899 = vpop.f32.mrf.mxu0
    %1900 = vdwg.mxu0
    %1901 = vmatpush.bf16.msra.mxu0 %v579
    %1902 = vmatpush.bf16.msra.mxu0 %v578
    %1903 = vmatpush.bf16.msra.mxu0 %v577
    %1904 = vmatpush.bf16.msra.mxu0 %v576
    %1905 = vmatpush.bf16.msra.mxu0 %v575
    %1906 = vmatpush.bf16.msra.mxu0 %v574
    %1907 = vmatpush.bf16.msra.mxu0 %v573
    %1908 = vmatpush.bf16.msra.mxu0 %v572
    %1909 = vmatmul.bf16.gmra.mxu0 %v1857
    %v1910 = vpop.f32.mrf.mxu0
    %v1911 = vadd.f32 %v1898, %v1910
    %v1912 = vpop.f32.mrf.mxu0
    %1913 = vdwg.mxu0
    %1914 = vmatpush.bf16.msra.mxu0 %v587
    %1915 = vmatpush.bf16.msra.mxu0 %v586
    %1916 = vmatpush.bf16.msra.mxu0 %v585
    %1917 = vmatpush.bf16.msra.mxu0 %v584
    %1918 = vmatpush.bf16.msra.mxu0 %v583
    %1919 = vmatpush.bf16.msra.mxu0 %v582
    %1920 = vmatpush.bf16.msra.mxu0 %v581
    %1921 = vmatpush.bf16.msra.mxu0 %v580
    %1922 = vmatmul.bf16.gmra.mxu0 %v1858
    %v1923 = vpop.f32.mrf.mxu0
    %v1924 = vadd.f32 %v1911, %v1923
    %v1925 = vpop.f32.mrf.mxu0
    %1926 = vdwg.mxu0
    %1927 = vmatpush.bf16.msra.mxu0 %v595
    %1928 = vmatpush.bf16.msra.mxu0 %v594
    %1929 = vmatpush.bf16.msra.mxu0 %v593
    %1930 = vmatpush.bf16.msra.mxu0 %v592
    %1931 = vmatpush.bf16.msra.mxu0 %v591
    %1932 = vmatpush.bf16.msra.mxu0 %v590
    %1933 = vmatpush.bf16.msra.mxu0 %v589
    %1934 = vmatpush.bf16.msra.mxu0 %v588
    %1935 = vmatmul.bf16.gmra.mxu0 %v1859
    %v1936 = vpop.f32.mrf.mxu0
    %v1937 = vadd.f32 %v1924, %v1936
    %v1938 = vpop.f32.mrf.mxu0
    %1939 = vdwg.mxu0
    %1940 = vmatpush.bf16.msra.mxu0 %v603
    %1941 = vmatpush.bf16.msra.mxu0 %v602
    %1942 = vmatpush.bf16.msra.mxu0 %v601
    %1943 = vmatpush.bf16.msra.mxu0 %v600
    %1944 = vmatpush.bf16.msra.mxu0 %v599
    %1945 = vmatpush.bf16.msra.mxu0 %v598
    %1946 = vmatpush.bf16.msra.mxu0 %v597
    %1947 = vmatpush.bf16.msra.mxu0 %v596
    %1948 = vmatmul.bf16.gmra.mxu0 %v1860
    %v1949 = vpop.f32.mrf.mxu0
    %v1950 = vadd.f32 %v1937, %v1949
    %v1951 = vpop.f32.mrf.mxu0
    %1952 = vdwg.mxu0
    %1953 = vmatpush.bf16.msra.mxu0 %v611
    %1954 = vmatpush.bf16.msra.mxu0 %v610
    %1955 = vmatpush.bf16.msra.mxu0 %v609
    %1956 = vmatpush.bf16.msra.mxu0 %v608
    %1957 = vmatpush.bf16.msra.mxu0 %v607
    %1958 = vmatpush.bf16.msra.mxu0 %v606
    %1959 = vmatpush.bf16.msra.mxu0 %v605
    %1960 = vmatpush.bf16.msra.mxu0 %v604
    %1961 = vmatmul.bf16.gmra.mxu0 %v1861
    %v1962 = vpop.f32.mrf.mxu0
    %v1963 = vadd.f32 %v1950, %v1962
    %v1964 = vpop.f32.mrf.mxu0
    %1965 = vdwg.mxu0
    %1966 = vmax.xlane.f32.xlu0 %v1963
    %v1967 = vpop.xlane.xlu0 %1966
    %v1968 = vsub.f32 %v1963, %v1967
    %v1969 = vmul.f32 %v1968, 1.442695
    %v1970 = vpow.pop %v1969
    %1971 = vadd.xlane.f32.xlu0 %v1970
    %v1972 = vpop.xlane.xlu0 %1971
    %v1973 = vlog2.pop %v1972
    %v1974 = vmul.f32 %v1973, 0.6931472
    %v1975 = vsub.f32 %v1968, %v1974
    %v1976 = vsub.f32 %v789, %v1975
    %v1977 = vmul.f32 %v791, %v1976
    %1978 = vadd.xlane.f32.xlu0 %v1977
    %v1979 = vpop.xlane.xlu0 %1978
    %s1980 = smul.u32 0, 8
    %v1981 = vlaneseq
    %v1982 = vshrl.u32 %v1981, 7
    %v1983 = vstv %s1980
    %v1984 = vadd.s32 %v1983, %v1982
    %vm1985 = vcmp.lt.s32.totalorder %v1984, 2
    %v1986 = vsel %vm1985, %v1979, 0.0
    %vm1987 = vcmask 7168
    %v1988 = vsel %vm1987, %v1986, 0.0
    %1989 = vadd.xlane.f32.xlu0 %v1988
    %v1990 = vpop.xlane.xlu0 %1989
    %v1991 = vrot.slane %v1990, 4
    %v1992 = vadd.f32 %v1990, %v1991
    %v1993 = vrot.slane %v1992, 2
    %v1994 = vadd.f32 %v1992, %v1993
    %v1995 = vrot.slane %v1994, 1
    %v1996 = vadd.f32 %v1994, %v1995
    %s1997 = vtos %v1996
    %s1998 = smul.f32 %s1997, 0.5
    %s1999 = scalar_lea.smem [#allocation10], 0
    %2000 = sst [smem:[%s1999]] %s1998
    // Predicated region
    $region38: #{tpu_custom_call.1} parent=1 // pred_check
      _
    $region39: #{tpu_custom_call.1} parent=1 // pred_check_branch
      %2002 = sbr.rel (0) target = $region41
    $region40: #{tpu_custom_call.1} parent=1 // pred_region
      %2004 = vsyncadd [#allocation4], 0
      %s2006 = sshll.u32 %s5, 4
      %s2007 = int_to_ptr.hbm [resolvable:$true] %s2006
      %2009 = dma.smem_to_hbm [#allocation10], 16, %s2007, [#allocation4]
    $region41: #{tpu_custom_call.1} parent=1 // pred_fallthru
      _
    // Predicated region
    $region42: #{tpu_custom_call.1} parent=1 // pred_check
      _
    $region43: #{tpu_custom_call.1} parent=1 // pred_check_branch
      %2011 = sbr.rel (0) target = $region45
    $region44: #{tpu_custom_call.1} parent=1 // pred_region
      %2013 = dma.done [#allocation4], 16
    $region45: #{tpu_custom_call.1} parent=1 // pred_fallthru
      _
    %2014 = sfence
    %2015 = vsyncpa [#allocation3], 1
    %2016 = vsyncpa [#allocation6], 1
    %2017 = vsyncpa [#allocation9], 1
    %2018 = vsyncpa [#allocation4], 1

</llo_original>
